<compile_context>
chip_gen: v5e
topology: v5e:2x2
jax: 0.10.0
libtpu: 0.0.40
codegen_flags: <defaults>
</compile_context>

<pallas_src>
import jax
import jax.numpy as jnp
from jax.experimental import pallas as pl
from jax.experimental.pallas import tpu as pltpu


def _round_up(x, m):
    return ((x + m - 1) // m) * m


def _vmem_limit_bytes():
    # Generation-aware scoped-VMEM limit: ~3/4 of physical VMEM, capped at
    # 100 MiB  (=> ~48 MiB on v7x, ~96 MiB on v5e / v6e).
    try:
        cap = pltpu.get_tpu_info().vmem_capacity_bytes
    except Exception:  # query unavailable -> conservative (v7x-safe) default
        cap = 64 * 1024 * 1024
    return int(min(100 * 1024 * 1024, cap * 3 // 4))


def _packed_gather_kernel(*refs):
    # refs = (idx_0, ..., idx_{G-1}, table, out)
    #   idx_g : (TM, 1)      int32  -- id of token m*G + g for packed row m
    #   table : (V_pad, E)   bf16   -- fused table, resident in VMEM
    #   out   : (TM, G*E)    f32    -- G tokens packed per row -> lane-dense
    *idx_refs, table_ref, out_ref = refs
    v_pad, e = table_ref.shape
    # (1, V_pad) lane iota; the compare broadcasts it against each (TM, 1)
    # index column -> (TM, V_pad) one-hot built directly in the table dtype.
    col = jax.lax.broadcasted_iota(jnp.int32, (1, v_pad), 1)
    for g, idx_ref in enumerate(idx_refs):
        onehot = (idx_ref[...] == col).astype(table_ref.dtype)      # (TM, V_pad)
        # MXU: contraction dim V_pad is 128-aligned; selects exactly one row,
        # so the f32-accumulated result is the (bf16) table row, bit-exact.
        part = jnp.dot(onehot, table_ref[...],
                       preferred_element_type=jnp.float32)          # (TM, E)
        out_ref[:, g * e:(g + 1) * e] = part.astype(out_ref.dtype)


def fused_embedding_lookup(idx, table, *, tm=256):
    """Fused multi-vocab embedding lookup.

    idx:   (B, L_total) int32 row ids into the fused (offset) table.
    table: (V_pad, E) fused embedding table (bf16 or f32), rows padded to x128.
    Returns (B, L_total, E) float32.
    """
    B, L = idx.shape
    v_pad, E = table.shape
    N = B * L

    # Pack G tokens per output row so the output block's lane dim is 128
    # (unmasked stores) and the epilogue is a contiguous reshape, not a
    # transpose.  Falls back to G=1 (token-major rows of width E) otherwise.
    G = 128 // E if (0 < E < 128 and 128 % E == 0) else 1
    M = pl.cdiv(N, G)                         # packed output rows needed

    # Packed rows per grid step (G*TM tokens / step):
    #  * default 256 rows (= 1024 tokens at E=32) to amortize grid overhead,
    #  * at least 2 grid steps when possible (both v7x TensorCores get work),
    #  * transient one-hot (TM x V_pad, table dtype) kept well under VMEM.
    itemsize = table.dtype.itemsize
    tm = max(8, min(tm, _round_up(pl.cdiv(M, 2), 8)))
    tm = max(8, min(tm, (6 * 1024 * 1024 // (v_pad * itemsize)) // 8 * 8))
    m_pad = _round_up(M, tm)

    # Flatten + pad the token ids, then split into G index columns:
    # idx_inputs[g][m, 0] is the id of token m*G + g.  (Tiny int32 data — this
    # replaces moving the embeddings themselves around after the kernel.)
    flat = jnp.pad(idx.reshape(-1).astype(jnp.int32), (0, m_pad * G - N))
    cols = flat.reshape(m_pad, G)
    idx_inputs = [cols[:, g:g + 1] for g in range(G)]             # each (m_pad, 1)

    idx_specs = [pl.BlockSpec((tm, 1), lambda i: (i, 0)) for _ in range(G)]
    out_spec = pl.BlockSpec((tm, G * E), lambda i: (i, 0))

    def _call(table_spec):
        return pl.pallas_call(
            _packed_gather_kernel,
            out_shape=jax.ShapeDtypeStruct((m_pad, G * E), jnp.float32),
            grid=(m_pad // tm,),
            in_specs=idx_specs + [table_spec],
            out_specs=out_spec,
            compiler_params=pltpu.CompilerParams(
                dimension_semantics=("parallel",),
                vmem_limit_bytes=_vmem_limit_bytes()),
        )(*idx_inputs, table)

    try:
        # Resident table (constant index_map): request a single VMEM buffer so
        # it is not double-buffered — halves its footprint, key on v7x.
        out_packed = _call(pl.BlockSpec((v_pad, E), lambda i: (0, 0),
                                        pipeline_mode=pl.Buffered(1)))
    except Exception:
        # pipeline_mode not supported by this jax/libtpu build -> fall back to
        # the default (double-buffered) resident table; kernel is identical.
        out_packed = _call(pl.BlockSpec((v_pad, E), lambda i: (0, 0)))

    # Row-major unpack: (m_pad, G*E) -> (m_pad*G, E) is a contiguous reshape
    # (no transpose pass over the output), then drop the padded tail.
    return out_packed.reshape(m_pad * G, E)[:N].reshape(B, L, E)


class InputEventEmbeddingPallas:
    """JAX/Pallas port of pytrial's InputEventEmbedding (fused single kernel)."""

    def __init__(self, orders, vocab_size, emb_size, padding_idx, key,
                 table_dtype=jnp.bfloat16):
        self.orders = list(orders)
        self.emb_size = emb_size
        self.padding_idx = padding_idx

        keys = jax.random.split(key, len(self.orders))
        self.tables = {}       # per-order tables (kernel storage dtype)
        self.offsets = {}      # row offset of each order inside the fused table
        stacked = []
        off = 0
        for i, order in enumerate(self.orders):
            tbl = jax.random.normal(keys[i], (vocab_size[i], emb_size),
                                    dtype=jnp.float32)
            tbl = tbl.at[padding_idx].set(0.0)   # nn.Embedding zeroes padding row
            # bf16 storage: native MXU path on v6e/v7x and half the VMEM/HBM
            # traffic.  Intentional one-time weight quantization; the lookup
            # itself is then exact.  Pass table_dtype=jnp.float32 to disable.
            tbl = tbl.astype(table_dtype)
            self.tables[order] = tbl
            self.offsets[order] = off
            stacked.append(tbl)
            off += vocab_size[i]

        v_pad = _round_up(off, 128)              # 128-align the contraction dim
        fused = jnp.concatenate(stacked, axis=0)
        fused = jnp.pad(fused, ((0, v_pad - off), (0, 0)))   # zero rows: inert
        self.fused_table = fused                 # (V_pad, E)

    def __call__(self, inputs):
        # inputs: {'v': {order: (B, L_k) int32 codes}}.
        # Like the torch forward, the concatenation order follows the *input
        # dict* iteration order.  Per-order offsets map each code into the
        # fused table's row space, so the concat happens on the index side.
        idx_list = []
        for k, v in inputs["v"].items():
            idx_list.append(v.astype(jnp.int32) + self.offsets[k])
        idx = jnp.concatenate(idx_list, axis=1)  # (B, sum_k L_k)
        return fused_embedding_lookup(idx, self.fused_table)


if __name__ == "__main__":
    key = jax.random.PRNGKey(0)
    orders = ["medication", "diagnosis", "procedure"]
    vocab_size = [64, 48, 32]
    emb_size = 32
    padding_idx = 0
    B = 2
    seq_lens = {"medication": 8, "diagnosis": 6, "procedure": 4}

    k_mod, k_in = jax.random.split(key)
    module = InputEventEmbeddingPallas(orders, vocab_size, emb_size,
                                       padding_idx, k_mod)

    # Deterministic integer code inputs (0 == padding_idx appears too).
    inputs = {"v": {}}
    k_cur = k_in
    for i, order in enumerate(orders):
        k_cur, k_use = jax.random.split(k_cur)
        inputs["v"][order] = jax.random.randint(
            k_use, (B, seq_lens[order]), 0, vocab_size[i], dtype=jnp.int32)

    out = module(inputs)
    out = jax.block_until_ready(out)

    # Reference: plain JAX gather from the (bf16-stored) per-order tables,
    # concatenated in the same (input-dict) order the kernel used.  The one-hot
    # matmul selects exactly one row with f32 accumulation, so this is exact.
    ref = jnp.concatenate(
        [module.tables[k][v].astype(jnp.float32)
         for k, v in inputs["v"].items()], axis=1)
    assert out.shape == (B, sum(seq_lens.values()), emb_size), out.shape
    assert out.dtype == jnp.float32
    assert jnp.allclose(out, ref, atol=1e-6), "mismatch vs reference gather"

    print("KERNEL_OK")
</pallas_src>

<mosaic_0001>
module attributes {stable_mosaic.version = 11 : i64} {
  func.func @_packed_gather_kernel(%arg0: i32, %arg1: memref<8x1xi32, #tpu.memory_space<vmem>>, %arg2: memref<8x1xi32, #tpu.memory_space<vmem>>, %arg3: memref<8x1xi32, #tpu.memory_space<vmem>>, %arg4: memref<8x1xi32, #tpu.memory_space<vmem>>, %arg5: memref<256x32xbf16, #tpu.memory_space<vmem>>, %arg6: memref<8x128xf32, #tpu.memory_space<vmem>>) attributes {dimension_semantics = [#tpu.dimension_semantics<parallel>], iteration_bounds = array<i64: 2>, scalar_prefetch = 0 : i64, scratch_operands = 0 : i64, tpu.core_type = #tpu.core_type<tc>, window_params = [{transform_indices = @transform_0, window_bounds = array<i64: 8, 1>}, {transform_indices = @transform_1, window_bounds = array<i64: 8, 1>}, {transform_indices = @transform_2, window_bounds = array<i64: 8, 1>}, {transform_indices = @transform_3, window_bounds = array<i64: 8, 1>}, {pipeline_mode = #tpu.pipeline_mode<synchronous>, transform_indices = @transform_4, window_bounds = array<i64: 256, 32>}, {transform_indices = @transform_5, window_bounds = array<i64: 8, 128>}]} {
    %0 = tpu.iota {dimensions = array<i32: 1>} : vector<1x256xi32>
    %c0 = arith.constant 0 : index
    %c0_0 = arith.constant 0 : index
    %1 = vector.load %arg1[%c0, %c0_0] : memref<8x1xi32, #tpu.memory_space<vmem>>, vector<8x1xi32>
    %2 = vector.broadcast %1 : vector<8x1xi32> to vector<8x256xi32>
    %3 = vector.broadcast %0 : vector<1x256xi32> to vector<8x256xi32>
    %4 = arith.cmpi eq, %2, %3 : vector<8x256xi32>
    %5 = arith.extui %4 : vector<8x256xi1> to vector<8x256xi32>
    %6 = arith.sitofp %5 : vector<8x256xi32> to vector<8x256xf32>
    %7 = arith.truncf %6 : vector<8x256xf32> to vector<8x256xbf16>
    %c0_1 = arith.constant 0 : index
    %c0_2 = arith.constant 0 : index
    %8 = vector.load %arg5[%c0_1, %c0_2] : memref<256x32xbf16, #tpu.memory_space<vmem>>, vector<256x32xbf16>
    %cst = arith.constant dense<0.000000e+00> : vector<8x32xf32>
    %9 = tpu.matmul %7, %8, %cst {dimension_numbers = #tpu.dot_dimension_numbers<[1], [0], [0], [1], [0, 0, 1, 1], [], []>} : vector<8x256xbf16>, vector<256x32xbf16>, vector<8x32xf32> -> vector<8x32xf32>
    %c0_3 = arith.constant 0 : index
    %c0_4 = arith.constant 0 : index
    %10 = vector.load %arg6[%c0_3, %c0_4] : memref<8x128xf32, #tpu.memory_space<vmem>>, vector<8x32xf32>
    tpu.vector_store %arg6[%c0_3, %c0_4], %9 {strides = array<i32>} : memref<8x128xf32, #tpu.memory_space<vmem>>, vector<8x32xf32>,
    %c0_5 = arith.constant 0 : index
    %c0_6 = arith.constant 0 : index
    %11 = vector.load %arg2[%c0_5, %c0_6] : memref<8x1xi32, #tpu.memory_space<vmem>>, vector<8x1xi32>
    %12 = vector.broadcast %11 : vector<8x1xi32> to vector<8x256xi32>
    %13 = vector.broadcast %0 : vector<1x256xi32> to vector<8x256xi32>
    %14 = arith.cmpi eq, %12, %13 : vector<8x256xi32>
    %15 = arith.extui %14 : vector<8x256xi1> to vector<8x256xi32>
    %16 = arith.sitofp %15 : vector<8x256xi32> to vector<8x256xf32>
    %17 = arith.truncf %16 : vector<8x256xf32> to vector<8x256xbf16>
    %c0_7 = arith.constant 0 : index
    %c0_8 = arith.constant 0 : index
    %18 = vector.load %arg5[%c0_7, %c0_8] : memref<256x32xbf16, #tpu.memory_space<vmem>>, vector<256x32xbf16>
    %cst_9 = arith.constant dense<0.000000e+00> : vector<8x32xf32>
    %19 = tpu.matmul %17, %18, %cst_9 {dimension_numbers = #tpu.dot_dimension_numbers<[1], [0], [0], [1], [0, 0, 1, 1], [], []>} : vector<8x256xbf16>, vector<256x32xbf16>, vector<8x32xf32> -> vector<8x32xf32>
    %c0_10 = arith.constant 0 : index
    %c32 = arith.constant 32 : index
    %20 = vector.load %arg6[%c0_10, %c32] : memref<8x128xf32, #tpu.memory_space<vmem>>, vector<8x32xf32>
    tpu.vector_store %arg6[%c0_10, %c32], %19 {strides = array<i32>} : memref<8x128xf32, #tpu.memory_space<vmem>>, vector<8x32xf32>,
    %c0_11 = arith.constant 0 : index
    %c0_12 = arith.constant 0 : index
    %21 = vector.load %arg3[%c0_11, %c0_12] : memref<8x1xi32, #tpu.memory_space<vmem>>, vector<8x1xi32>
    %22 = vector.broadcast %21 : vector<8x1xi32> to vector<8x256xi32>
    %23 = vector.broadcast %0 : vector<1x256xi32> to vector<8x256xi32>
    %24 = arith.cmpi eq, %22, %23 : vector<8x256xi32>
    %25 = arith.extui %24 : vector<8x256xi1> to vector<8x256xi32>
    %26 = arith.sitofp %25 : vector<8x256xi32> to vector<8x256xf32>
    %27 = arith.truncf %26 : vector<8x256xf32> to vector<8x256xbf16>
    %c0_13 = arith.constant 0 : index
    %c0_14 = arith.constant 0 : index
    %28 = vector.load %arg5[%c0_13, %c0_14] : memref<256x32xbf16, #tpu.memory_space<vmem>>, vector<256x32xbf16>
    %cst_15 = arith.constant dense<0.000000e+00> : vector<8x32xf32>
    %29 = tpu.matmul %27, %28, %cst_15 {dimension_numbers = #tpu.dot_dimension_numbers<[1], [0], [0], [1], [0, 0, 1, 1], [], []>} : vector<8x256xbf16>, vector<256x32xbf16>, vector<8x32xf32> -> vector<8x32xf32>
    %c0_16 = arith.constant 0 : index
    %c64 = arith.constant 64 : index
    %30 = vector.load %arg6[%c0_16, %c64] : memref<8x128xf32, #tpu.memory_space<vmem>>, vector<8x32xf32>
    tpu.vector_store %arg6[%c0_16, %c64], %29 {strides = array<i32>} : memref<8x128xf32, #tpu.memory_space<vmem>>, vector<8x32xf32>,
    %c0_17 = arith.constant 0 : index
    %c0_18 = arith.constant 0 : index
    %31 = vector.load %arg4[%c0_17, %c0_18] : memref<8x1xi32, #tpu.memory_space<vmem>>, vector<8x1xi32>
    %32 = vector.broadcast %31 : vector<8x1xi32> to vector<8x256xi32>
    %33 = vector.broadcast %0 : vector<1x256xi32> to vector<8x256xi32>
    %34 = arith.cmpi eq, %32, %33 : vector<8x256xi32>
    %35 = arith.extui %34 : vector<8x256xi1> to vector<8x256xi32>
    %36 = arith.sitofp %35 : vector<8x256xi32> to vector<8x256xf32>
    %37 = arith.truncf %36 : vector<8x256xf32> to vector<8x256xbf16>
    %c0_19 = arith.constant 0 : index
    %c0_20 = arith.constant 0 : index
    %38 = vector.load %arg5[%c0_19, %c0_20] : memref<256x32xbf16, #tpu.memory_space<vmem>>, vector<256x32xbf16>
    %cst_21 = arith.constant dense<0.000000e+00> : vector<8x32xf32>
    %39 = tpu.matmul %37, %38, %cst_21 {dimension_numbers = #tpu.dot_dimension_numbers<[1], [0], [0], [1], [0, 0, 1, 1], [], []>} : vector<8x256xbf16>, vector<256x32xbf16>, vector<8x32xf32> -> vector<8x32xf32>
    %c0_22 = arith.constant 0 : index
    %c96 = arith.constant 96 : index
    %40 = vector.load %arg6[%c0_22, %c96] : memref<8x128xf32, #tpu.memory_space<vmem>>, vector<8x32xf32>
    tpu.vector_store %arg6[%c0_22, %c96], %39 {strides = array<i32>} : memref<8x128xf32, #tpu.memory_space<vmem>>, vector<8x32xf32>,
    return
  }
  func.func @transform_0(%arg0: i32) -> (i32, i32) {
    %c0_i32 = arith.constant 0 : i32
    %c0_i32_0 = arith.constant 0 : i32
    return %arg0, %c0_i32 : i32, i32
  }
  func.func @transform_1(%arg0: i32) -> (i32, i32) {
    %c0_i32 = arith.constant 0 : i32
    %c0_i32_0 = arith.constant 0 : i32
    return %arg0, %c0_i32 : i32, i32
  }
  func.func @transform_2(%arg0: i32) -> (i32, i32) {
    %c0_i32 = arith.constant 0 : i32
    %c0_i32_0 = arith.constant 0 : i32
    return %arg0, %c0_i32 : i32, i32
  }
  func.func @transform_3(%arg0: i32) -> (i32, i32) {
    %c0_i32 = arith.constant 0 : i32
    %c0_i32_0 = arith.constant 0 : i32
    return %arg0, %c0_i32 : i32, i32
  }
  func.func @transform_4(%arg0: i32) -> (i32, i32) {
    %c0_i32 = arith.constant 0 : i32
    %c0_i32_0 = arith.constant 0 : i32
    %c0_i32_1 = arith.constant 0 : i32
    return %c0_i32, %c0_i32_0 : i32, i32
  }
  func.func @transform_5(%arg0: i32) -> (i32, i32) {
    %c0_i32 = arith.constant 0 : i32
    %c0_i32_0 = arith.constant 0 : i32
    return %arg0, %c0_i32 : i32, i32
  }
}

module attributes {stable_mosaic.version = 11 : i64} {
  func.func @_packed_gather_kernel(%arg0: i32, %arg1: memref<8x1xi32, #tpu.memory_space<vmem>>, %arg2: memref<8x1xi32, #tpu.memory_space<vmem>>, %arg3: memref<8x1xi32, #tpu.memory_space<vmem>>, %arg4: memref<8x1xi32, #tpu.memory_space<vmem>>, %arg5: memref<256x32xbf16, #tpu.memory_space<vmem>>, %arg6: memref<8x128xf32, #tpu.memory_space<vmem>>) attributes {dimension_semantics = [#tpu.dimension_semantics<parallel>], iteration_bounds = array<i64: 2>, scalar_prefetch = 0 : i64, scratch_operands = 0 : i64, tpu.core_type = #tpu.core_type<tc>, window_params = [{transform_indices = @transform_0, window_bounds = array<i64: 8, 1>}, {transform_indices = @transform_1, window_bounds = array<i64: 8, 1>}, {transform_indices = @transform_2, window_bounds = array<i64: 8, 1>}, {transform_indices = @transform_3, window_bounds = array<i64: 8, 1>}, {pipeline_mode = #tpu.pipeline_mode<synchronous>, transform_indices = @transform_4, window_bounds = array<i64: 256, 32>}, {transform_indices = @transform_5, window_bounds = array<i64: 8, 128>}]} {
    %0 = tpu.iota {dimensions = array<i32: 1>} : vector<1x256xi32>
    %c0 = arith.constant 0 : index
    %c0_0 = arith.constant 0 : index
    %1 = vector.load %arg1[%c0, %c0_0] : memref<8x1xi32, #tpu.memory_space<vmem>>, vector<8x1xi32>
    %2 = vector.broadcast %1 : vector<8x1xi32> to vector<8x256xi32>
    %3 = vector.broadcast %0 : vector<1x256xi32> to vector<8x256xi32>
    %4 = arith.cmpi eq, %2, %3 : vector<8x256xi32>
    %5 = arith.extui %4 : vector<8x256xi1> to vector<8x256xi32>
    %6 = arith.sitofp %5 : vector<8x256xi32> to vector<8x256xf32>
    %7 = arith.truncf %6 : vector<8x256xf32> to vector<8x256xbf16>
    %c0_1 = arith.constant 0 : index
    %c0_2 = arith.constant 0 : index
    %8 = vector.load %arg5[%c0_1, %c0_2] : memref<256x32xbf16, #tpu.memory_space<vmem>>, vector<256x32xbf16>
    %cst = arith.constant dense<0.000000e+00> : vector<8x32xf32>
    %9 = tpu.matmul %7, %8, %cst {dimension_numbers = #tpu.dot_dimension_numbers<[1], [0], [0], [1], [0, 0, 1, 1], [], []>} : vector<8x256xbf16>, vector<256x32xbf16>, vector<8x32xf32> -> vector<8x32xf32>
    %c0_3 = arith.constant 0 : index
    %c0_4 = arith.constant 0 : index
    %10 = vector.load %arg6[%c0_3, %c0_4] : memref<8x128xf32, #tpu.memory_space<vmem>>, vector<8x32xf32>
    tpu.vector_store %arg6[%c0_3, %c0_4], %9 {strides = array<i32>} : memref<8x128xf32, #tpu.memory_space<vmem>>, vector<8x32xf32>,
    %c0_5 = arith.constant 0 : index
    %c0_6 = arith.constant 0 : index
    %11 = vector.load %arg2[%c0_5, %c0_6] : memref<8x1xi32, #tpu.memory_space<vmem>>, vector<8x1xi32>
    %12 = vector.broadcast %11 : vector<8x1xi32> to vector<8x256xi32>
    %13 = vector.broadcast %0 : vector<1x256xi32> to vector<8x256xi32>
    %14 = arith.cmpi eq, %12, %13 : vector<8x256xi32>
    %15 = arith.extui %14 : vector<8x256xi1> to vector<8x256xi32>
    %16 = arith.sitofp %15 : vector<8x256xi32> to vector<8x256xf32>
    %17 = arith.truncf %16 : vector<8x256xf32> to vector<8x256xbf16>
    %c0_7 = arith.constant 0 : index
    %c0_8 = arith.constant 0 : index
    %18 = vector.load %arg5[%c0_7, %c0_8] : memref<256x32xbf16, #tpu.memory_space<vmem>>, vector<256x32xbf16>
    %cst_9 = arith.constant dense<0.000000e+00> : vector<8x32xf32>
    %19 = tpu.matmul %17, %18, %cst_9 {dimension_numbers = #tpu.dot_dimension_numbers<[1], [0], [0], [1], [0, 0, 1, 1], [], []>} : vector<8x256xbf16>, vector<256x32xbf16>, vector<8x32xf32> -> vector<8x32xf32>
    %c0_10 = arith.constant 0 : index
    %c32 = arith.constant 32 : index
    %20 = vector.load %arg6[%c0_10, %c32] : memref<8x128xf32, #tpu.memory_space<vmem>>, vector<8x32xf32>
    tpu.vector_store %arg6[%c0_10, %c32], %19 {strides = array<i32>} : memref<8x128xf32, #tpu.memory_space<vmem>>, vector<8x32xf32>,
    %c0_11 = arith.constant 0 : index
    %c0_12 = arith.constant 0 : index
    %21 = vector.load %arg3[%c0_11, %c0_12] : memref<8x1xi32, #tpu.memory_space<vmem>>, vector<8x1xi32>
    %22 = vector.broadcast %21 : vector<8x1xi32> to vector<8x256xi32>
    %23 = vector.broadcast %0 : vector<1x256xi32> to vector<8x256xi32>
    %24 = arith.cmpi eq, %22, %23 : vector<8x256xi32>
    %25 = arith.extui %24 : vector<8x256xi1> to vector<8x256xi32>
    %26 = arith.sitofp %25 : vector<8x256xi32> to vector<8x256xf32>
    %27 = arith.truncf %26 : vector<8x256xf32> to vector<8x256xbf16>
    %c0_13 = arith.constant 0 : index
    %c0_14 = arith.constant 0 : index
    %28 = vector.load %arg5[%c0_13, %c0_14] : memref<256x32xbf16, #tpu.memory_space<vmem>>, vector<256x32xbf16>
    %cst_15 = arith.constant dense<0.000000e+00> : vector<8x32xf32>
    %29 = tpu.matmul %27, %28, %cst_15 {dimension_numbers = #tpu.dot_dimension_numbers<[1], [0], [0], [1], [0, 0, 1, 1], [], []>} : vector<8x256xbf16>, vector<256x32xbf16>, vector<8x32xf32> -> vector<8x32xf32>
    %c0_16 = arith.constant 0 : index
    %c64 = arith.constant 64 : index
    %30 = vector.load %arg6[%c0_16, %c64] : memref<8x128xf32, #tpu.memory_space<vmem>>, vector<8x32xf32>
    tpu.vector_store %arg6[%c0_16, %c64], %29 {strides = array<i32>} : memref<8x128xf32, #tpu.memory_space<vmem>>, vector<8x32xf32>,
    %c0_17 = arith.constant 0 : index
    %c0_18 = arith.constant 0 : index
    %31 = vector.load %arg4[%c0_17, %c0_18] : memref<8x1xi32, #tpu.memory_space<vmem>>, vector<8x1xi32>
    %32 = vector.broadcast %31 : vector<8x1xi32> to vector<8x256xi32>
    %33 = vector.broadcast %0 : vector<1x256xi32> to vector<8x256xi32>
    %34 = arith.cmpi eq, %32, %33 : vector<8x256xi32>
    %35 = arith.extui %34 : vector<8x256xi1> to vector<8x256xi32>
    %36 = arith.sitofp %35 : vector<8x256xi32> to vector<8x256xf32>
    %37 = arith.truncf %36 : vector<8x256xf32> to vector<8x256xbf16>
    %c0_19 = arith.constant 0 : index
    %c0_20 = arith.constant 0 : index
    %38 = vector.load %arg5[%c0_19, %c0_20] : memref<256x32xbf16, #tpu.memory_space<vmem>>, vector<256x32xbf16>
    %cst_21 = arith.constant dense<0.000000e+00> : vector<8x32xf32>
    %39 = tpu.matmul %37, %38, %cst_21 {dimension_numbers = #tpu.dot_dimension_numbers<[1], [0], [0], [1], [0, 0, 1, 1], [], []>} : vector<8x256xbf16>, vector<256x32xbf16>, vector<8x32xf32> -> vector<8x32xf32>
    %c0_22 = arith.constant 0 : index
    %c96 = arith.constant 96 : index
    %40 = vector.load %arg6[%c0_22, %c96] : memref<8x128xf32, #tpu.memory_space<vmem>>, vector<8x32xf32>
    tpu.vector_store %arg6[%c0_22, %c96], %39 {strides = array<i32>} : memref<8x128xf32, #tpu.memory_space<vmem>>, vector<8x32xf32>,
    return
  }
  func.func @transform_0(%arg0: i32) -> (i32, i32) {
    %c0_i32 = arith.constant 0 : i32
    %c0_i32_0 = arith.constant 0 : i32
    return %arg0, %c0_i32 : i32, i32
  }
  func.func @transform_1(%arg0: i32) -> (i32, i32) {
    %c0_i32 = arith.constant 0 : i32
    %c0_i32_0 = arith.constant 0 : i32
    return %arg0, %c0_i32 : i32, i32
  }
  func.func @transform_2(%arg0: i32) -> (i32, i32) {
    %c0_i32 = arith.constant 0 : i32
    %c0_i32_0 = arith.constant 0 : i32
    return %arg0, %c0_i32 : i32, i32
  }
  func.func @transform_3(%arg0: i32) -> (i32, i32) {
    %c0_i32 = arith.constant 0 : i32
    %c0_i32_0 = arith.constant 0 : i32
    return %arg0, %c0_i32 : i32, i32
  }
  func.func @transform_4(%arg0: i32) -> (i32, i32) {
    %c0_i32 = arith.constant 0 : i32
    %c0_i32_0 = arith.constant 0 : i32
    %c0_i32_1 = arith.constant 0 : i32
    return %c0_i32, %c0_i32_0 : i32, i32
  }
  func.func @transform_5(%arg0: i32) -> (i32, i32) {
    %c0_i32 = arith.constant 0 : i32
    %c0_i32_0 = arith.constant 0 : i32
    return %arg0, %c0_i32 : i32, i32
  }
}

</mosaic_0001>

<llo_original>
// kernel: tpu_custom_call.1
$region0: #{tpu_custom_call.1}
  #allocation0 [shape = 'u32[]', space=smem, size = 0x4, offset = 0x4, fixed_abs, tag = 'smem constant byte address 0x4 - core index']
  #allocation1 [shape = 'u32[72,128]{1,0:T(1,128)}', space=vmem, size = 0x9000, scoped, tag = 'internal scratch']
  %s0 = inlined_call_operand.vmem [shape: s32[16,1], index: 0, kind: input, shape index: {}]
  %s1 = inlined_call_operand.vmem [shape: s32[16,1], index: 1, kind: input, shape index: {}]
  %s2 = inlined_call_operand.vmem [shape: s32[16,1], index: 2, kind: input, shape index: {}]
  %s3 = inlined_call_operand.vmem [shape: s32[16,1], index: 3, kind: input, shape index: {}]
  %s4 = inlined_call_operand.vmem [shape: bf16[256,32], index: 4, kind: input, shape index: {}]
  %s5 = inlined_call_operand.hbm [shape: f32[16,128], index: 5, kind: output, shape index: {}]
  %s6 = sld [smem:[#allocation0]]
  $region53: #{tpu_custom_call.1} parent=0
    _
  %s8 = ssub.s32 1, %s6
  %s9 = scalar_select 0, %s8, %s6
  $region1: #{tpu_custom_call.1} parent=0
    #allocation2 [shape = 'u8[8192]{0}', space=vmem, size = 0x2000, scoped, tag = 'output window, operand 0']
    #allocation3 [shape = 's32[2]{0}', space=sflag, size = 0x8, scoped, tag = 'scoped memory for tpu_custom_call.1']
    %10 = vsyncpa [#allocation3], 0
    %s11 = scalar_lea.sflag [#allocation3], 1
    %12 = vsyncpa %s11, 0
    loop: start=0, step=1, limit=4
    $region2: #{tpu_custom_call.1} parent=1 // loop_pre_header
      _
    $region3: #{tpu_custom_call.1} parent=1 // loop_header
      %s14 = sphi 0, %s18
      %p15 = scmp.ge.s32.totalorder %s14, 4
      %s24 = sphi 0, %s26
      %s27 = sphi 0, %s24
      %s28 = sphi 0, %s27
      %s44 = sphi 0, %s28
      %s50 = sphi 0, %s52
      %s53 = sphi 0, %s50
      %s54 = sphi 0, %s53
      %s70 = sphi 0, %s54
      %s76 = sphi 0, %s78
      %s79 = sphi 0, %s76
      %s80 = sphi 0, %s79
      %s96 = sphi 0, %s80
      %s102 = sphi 0, %s104
      %s105 = sphi 0, %s102
      %s106 = sphi 0, %s105
      %s122 = sphi 0, %s106
      %s126 = sphi 0, %s126
      %s128 = sphi 0, %s126
      %s129 = sphi 0, %s128
      %s143 = sphi 0, %s129
      %s149 = sphi 0, %s151
      %s152 = sphi 0, %s149
      %s153 = sphi 0, %s152
      %s169 = sphi 0, %s153
    $region4: #{tpu_custom_call.1} parent=1 // loop_header_branch
      %17 = sbr.rel (%p15) target = $region8
    $region5: #{tpu_custom_call.1} parent=1 // loop_body
      %s19 = ssub.s32 %s14, 1
      %s20 = ssub.s32 %s14, 2
      %s21 = sadd.s32 %s14, 1
      %s22 = ssub.s32 %s14, %s21
      %p23 = scmp.eq.s32.totalorder %s22, 0
      %s25 = sadd.s32 %s24, 1
      %s26 = scalar_select %p23, %s24, %s25
      %p29 = pneg %p23
      %p30 = scmp.eq.s32.totalorder %s14, 1
      %p31 = por %p29, %p30
      %p32 = scmp.ne.s32.totalorder %s24, %s27
      %p33 = scmp.eq.s32.totalorder %s14, 0
      %p34 = por %p32, %p33
      %p35 = scmp.ne.s32.totalorder %s24, %s27
      %p36 = scmp.eq.s32.totalorder %s19, 1
      %p37 = por %p35, %p36
      %p38 = scmp.ne.s32.totalorder %s27, %s28
      %p39 = scmp.eq.s32.totalorder %s19, 0
      %p40 = por %p38, %p39
      %p41 = scmp.ne.s32.totalorder %s27, %s28
      %p42 = scmp.eq.s32.totalorder %s20, 1
      %p43 = por %p41, %p42
      %p45 = scmp.ne.s32.totalorder %s28, %s44
      %p46 = scmp.eq.s32.totalorder %s20, 0
      %p47 = por %p45, %p46
      %s48 = ssub.s32 %s14, %s21
      %p49 = scmp.eq.s32.totalorder %s48, 0
      %s51 = sadd.s32 %s50, 1
      %s52 = scalar_select %p49, %s50, %s51
      %p55 = pneg %p49
      %p56 = scmp.eq.s32.totalorder %s14, 1
      %p57 = por %p55, %p56
      %p58 = scmp.ne.s32.totalorder %s50, %s53
      %p59 = scmp.eq.s32.totalorder %s14, 0
      %p60 = por %p58, %p59
      %p61 = scmp.ne.s32.totalorder %s50, %s53
      %p62 = scmp.eq.s32.totalorder %s19, 1
      %p63 = por %p61, %p62
      %p64 = scmp.ne.s32.totalorder %s53, %s54
      %p65 = scmp.eq.s32.totalorder %s19, 0
      %p66 = por %p64, %p65
      %p67 = scmp.ne.s32.totalorder %s53, %s54
      %p68 = scmp.eq.s32.totalorder %s20, 1
      %p69 = por %p67, %p68
      %p71 = scmp.ne.s32.totalorder %s54, %s70
      %p72 = scmp.eq.s32.totalorder %s20, 0
      %p73 = por %p71, %p72
      %s74 = ssub.s32 %s14, %s21
      %p75 = scmp.eq.s32.totalorder %s74, 0
      %s77 = sadd.s32 %s76, 1
      %s78 = scalar_select %p75, %s76, %s77
      %p81 = pneg %p75
      %p82 = scmp.eq.s32.totalorder %s14, 1
      %p83 = por %p81, %p82
      %p84 = scmp.ne.s32.totalorder %s76, %s79
      %p85 = scmp.eq.s32.totalorder %s14, 0
      %p86 = por %p84, %p85
      %p87 = scmp.ne.s32.totalorder %s76, %s79
      %p88 = scmp.eq.s32.totalorder %s19, 1
      %p89 = por %p87, %p88
      %p90 = scmp.ne.s32.totalorder %s79, %s80
      %p91 = scmp.eq.s32.totalorder %s19, 0
      %p92 = por %p90, %p91
      %p93 = scmp.ne.s32.totalorder %s79, %s80
      %p94 = scmp.eq.s32.totalorder %s20, 1
      %p95 = por %p93, %p94
      %p97 = scmp.ne.s32.totalorder %s80, %s96
      %p98 = scmp.eq.s32.totalorder %s20, 0
      %p99 = por %p97, %p98
      %s100 = ssub.s32 %s14, %s21
      %p101 = scmp.eq.s32.totalorder %s100, 0
      %s103 = sadd.s32 %s102, 1
      %s104 = scalar_select %p101, %s102, %s103
      %p107 = pneg %p101
      %p108 = scmp.eq.s32.totalorder %s14, 1
      %p109 = por %p107, %p108
      %p110 = scmp.ne.s32.totalorder %s102, %s105
      %p111 = scmp.eq.s32.totalorder %s14, 0
      %p112 = por %p110, %p111
      %p113 = scmp.ne.s32.totalorder %s102, %s105
      %p114 = scmp.eq.s32.totalorder %s19, 1
      %p115 = por %p113, %p114
      %p116 = scmp.ne.s32.totalorder %s105, %s106
      %p117 = scmp.eq.s32.totalorder %s19, 0
      %p118 = por %p116, %p117
      %p119 = scmp.ne.s32.totalorder %s105, %s106
      %p120 = scmp.eq.s32.totalorder %s20, 1
      %p121 = por %p119, %p120
      %p123 = scmp.ne.s32.totalorder %s106, %s122
      %p124 = scmp.eq.s32.totalorder %s20, 0
      %p125 = por %p123, %p124
      %s127 = sadd.s32 %s126, 1
      %p130 = scmp.eq.s32.totalorder %s14, 1
      %p131 = scmp.ne.s32.totalorder %s126, %s128
      %p132 = scmp.eq.s32.totalorder %s14, 0
      %p133 = por %p131, %p132
      %p134 = scmp.ne.s32.totalorder %s126, %s128
      %p135 = scmp.eq.s32.totalorder %s19, 1
      %p136 = por %p134, %p135
      %p137 = scmp.ne.s32.totalorder %s128, %s129
      %p138 = scmp.eq.s32.totalorder %s19, 0
      %p139 = por %p137, %p138
      %p140 = scmp.ne.s32.totalorder %s128, %s129
      %p141 = scmp.eq.s32.totalorder %s20, 1
      %p142 = por %p140, %p141
      %p144 = scmp.ne.s32.totalorder %s129, %s143
      %p145 = scmp.eq.s32.totalorder %s20, 0
      %p146 = por %p144, %p145
      %s147 = ssub.s32 %s14, %s21
      %p148 = scmp.eq.s32.totalorder %s147, 0
      %s150 = sadd.s32 %s149, 1
      %s151 = scalar_select %p148, %s149, %s150
      %p154 = pneg %p148
      %p155 = scmp.eq.s32.totalorder %s14, 1
      %p156 = por %p154, %p155
      %p157 = scmp.ne.s32.totalorder %s149, %s152
      %p158 = scmp.eq.s32.totalorder %s14, 0
      %p159 = por %p157, %p158
      %p160 = scmp.ne.s32.totalorder %s149, %s152
      %p161 = scmp.eq.s32.totalorder %s19, 1
      %p162 = por %p160, %p161
      %p163 = scmp.ne.s32.totalorder %s152, %s153
      %p164 = scmp.eq.s32.totalorder %s19, 0
      %p165 = por %p163, %p164
      %p166 = scmp.ne.s32.totalorder %s152, %s153
      %p167 = scmp.eq.s32.totalorder %s20, 1
      %p168 = por %p166, %p167
      %p170 = scmp.ne.s32.totalorder %s153, %s169
      %p171 = scmp.eq.s32.totalorder %s20, 0
      %p172 = por %p170, %p171
      %p173 = scmp.le.s32.totalorder 1, %s14
      %p174 = scmp.lt.s32.totalorder %s14, 3
      %p175 = pnand %p173, %p174
      %p176 = pneg %p175
      // Predicated region
      $region9: #{tpu_custom_call.1} parent=5 // pred_check
        _
      $region10: #{tpu_custom_call.1} parent=5 // pred_check_branch
        %178 = sbr.rel (%p175) target = $region12
      $region11: #{tpu_custom_call.1} parent=5 // pred_region
        %s179 = ssub.s32 %s14, 1
        // Predicated region
        $region13: #{tpu_custom_call.1} parent=11 // pred_check
          %p180 = pneg %p139
        $region14: #{tpu_custom_call.1} parent=11 // pred_check_branch
          %182 = sbr.rel (%p180) target = $region16
        $region15: #{tpu_custom_call.1} parent=11 // pred_region
          _
        $region16: #{tpu_custom_call.1} parent=11 // pred_fallthru
          _
      $region12: #{tpu_custom_call.1} parent=5 // pred_fallthru
        _
      %p183 = scmp.lt.s32.totalorder %s14, 2
      // Predicated region
      $region17: #{tpu_custom_call.1} parent=5 // pred_check
        %p184 = pneg %p183
      $region18: #{tpu_custom_call.1} parent=5 // pred_check_branch
        %186 = sbr.rel (%p184) target = $region20
      $region19: #{tpu_custom_call.1} parent=5 // pred_region
        // Predicated region
        $region21: #{tpu_custom_call.1} parent=19 // pred_check
          %p187 = pneg %p34
        $region22: #{tpu_custom_call.1} parent=19 // pred_check_branch
          %189 = sbr.rel (%p187) target = $region24
        $region23: #{tpu_custom_call.1} parent=19 // pred_region
          %p190 = scmp.lt.s32.totalorder %s14, 1
          %s191 = scalar_select %p190, %s14, 1
          %s192 = smul.addr %s191, 8
          %s193 = scalar_lea.vmem %s0, %s192
        $region24: #{tpu_custom_call.1} parent=19 // pred_fallthru
          _
        // Predicated region
        $region25: #{tpu_custom_call.1} parent=19 // pred_check
          %p194 = pneg %p60
        $region26: #{tpu_custom_call.1} parent=19 // pred_check_branch
          %196 = sbr.rel (%p194) target = $region28
        $region27: #{tpu_custom_call.1} parent=19 // pred_region
          %p197 = scmp.lt.s32.totalorder %s14, 1
          %s198 = scalar_select %p197, %s14, 1
          %s199 = smul.addr %s198, 8
          %s200 = scalar_lea.vmem %s1, %s199
        $region28: #{tpu_custom_call.1} parent=19 // pred_fallthru
          _
        // Predicated region
        $region29: #{tpu_custom_call.1} parent=19 // pred_check
          %p201 = pneg %p86
        $region30: #{tpu_custom_call.1} parent=19 // pred_check_branch
          %203 = sbr.rel (%p201) target = $region32
        $region31: #{tpu_custom_call.1} parent=19 // pred_region
          %p204 = scmp.lt.s32.totalorder %s14, 1
          %s205 = scalar_select %p204, %s14, 1
          %s206 = smul.addr %s205, 8
          %s207 = scalar_lea.vmem %s2, %s206
        $region32: #{tpu_custom_call.1} parent=19 // pred_fallthru
          _
        // Predicated region
        $region33: #{tpu_custom_call.1} parent=19 // pred_check
          %p208 = pneg %p112
        $region34: #{tpu_custom_call.1} parent=19 // pred_check_branch
          %210 = sbr.rel (%p208) target = $region36
        $region35: #{tpu_custom_call.1} parent=19 // pred_region
          %p211 = scmp.lt.s32.totalorder %s14, 1
          %s212 = scalar_select %p211, %s14, 1
          %s213 = smul.addr %s212, 8
          %s214 = scalar_lea.vmem %s3, %s213
        $region36: #{tpu_custom_call.1} parent=19 // pred_fallthru
          _
      $region20: #{tpu_custom_call.1} parent=5 // pred_fallthru
        _
      %p215 = scmp.le.s32.totalorder 1, %s14
      %p216 = scmp.lt.s32.totalorder %s14, 3
      %p217 = pnand %p215, %p216
      %p218 = pneg %p217
      // Predicated region
      $region37: #{tpu_custom_call.1} parent=5 // pred_check
        _
      $region38: #{tpu_custom_call.1} parent=5 // pred_check_branch
        %220 = sbr.rel (%p217) target = $region40
      $region39: #{tpu_custom_call.1} parent=5 // pred_region
        %s221 = ssub.s32 %s14, 1
        %p222 = scmp.lt.s32.totalorder %s19, 1
        %s223 = scalar_select %p222, %s19, 1
        %s224 = smul.addr %s223, 8
        %s225 = scalar_lea.vmem %s0, %s224
        %p226 = pneg %p40
        %p227 = pneg %p37
        %p228 = scmp.lt.s32.totalorder %s19, 1
        %s229 = scalar_select %p228, %s19, 1
        %s230 = smul.addr %s229, 8
        %s231 = scalar_lea.vmem %s1, %s230
        %p232 = pneg %p66
        %p233 = pneg %p63
        %p234 = scmp.lt.s32.totalorder %s19, 1
        %s235 = scalar_select %p234, %s19, 1
        %s236 = smul.addr %s235, 8
        %s237 = scalar_lea.vmem %s2, %s236
        %p238 = pneg %p92
        %p239 = pneg %p89
        %p240 = scmp.lt.s32.totalorder %s19, 1
        %s241 = scalar_select %p240, %s19, 1
        %s242 = smul.addr %s241, 8
        %s243 = scalar_lea.vmem %s3, %s242
        %p244 = pneg %p118
        %p245 = pneg %p115
        %p246 = pneg %p139
        %p247 = pneg %p136
        %p248 = pneg %p165
        %p249 = pneg %p162
        %s250 = sand.u32 %s152, 1
        %s251 = scalar_lea.sflag [#allocation3], %s250
        %s252 = sand.u32 %s152, 1
        %s253 = smul.addr %s252, 8
        %s254 = scalar_lea.vmem [#allocation2], %s253
        %p255 = scmp.lt.s32.totalorder %s19, 1
        %s256 = scalar_select %p255, %s19, 1
        %s257 = smul.addr %s256, 8
        %s258 = scalar_lea.vmem %s0, %s257
        %p259 = scmp.lt.s32.totalorder %s19, 1
        %s260 = scalar_select %p259, %s19, 1
        %s261 = smul.addr %s260, 8
        %s262 = scalar_lea.vmem %s1, %s261
        %p263 = scmp.lt.s32.totalorder %s19, 1
        %s264 = scalar_select %p263, %s19, 1
        %s265 = smul.addr %s264, 8
        %s266 = scalar_lea.vmem %s2, %s265
        %p267 = scmp.lt.s32.totalorder %s19, 1
        %s268 = scalar_select %p267, %s19, 1
        %s269 = smul.addr %s268, 8
        %s270 = scalar_lea.vmem %s3, %s269
        %v271 = vlaneseq
        %v272 = vand.u32 %v271, 127
        %v273 = vadd.s32 %v272, 128
        %v274 = vld [vmem:[%s258] sm:$0xff]
        %275 = vset.pattern.permute.xlu0 0
        %276 = vperm.xlu0 %275, %v274
        %v277 = vpop.permute.xlu0 %276
        %vm278 = vcmp.eq.s32.totalorder %v277, %v272
        %vm279 = vcmp.eq.s32.totalorder %v277, %v273
        %v280 = vsel %vm278, 1, 0
        %v281 = vsel %vm279, 1, 0
        %v282 = vcvt.s32.f32 %v280
        %v283 = vcvt.s32.f32 %v281
        %v284 = vpack.c.bf16 %v282, %v282
        %v285 = vpack.c.bf16 %v283, %v283
        %v286 = vld [vmem:[%s4] sm:$0xf]
        %v287 = vld [vmem:[%s4 + $0x4] sm:$0xf]
        %v288 = vld [vmem:[%s4 + $0x8] sm:$0xf]
        %v289 = vld [vmem:[%s4 + $0xc] sm:$0xf]
        %v290 = vld [vmem:[%s4 + $0x10] sm:$0xf]
        %v291 = vld [vmem:[%s4 + $0x14] sm:$0xf]
        %v292 = vld [vmem:[%s4 + $0x18] sm:$0xf]
        %v293 = vld [vmem:[%s4 + $0x1c] sm:$0xf]
        %v294 = vld [vmem:[%s4 + $0x20] sm:$0xf]
        %v295 = vld [vmem:[%s4 + $0x24] sm:$0xf]
        %v296 = vld [vmem:[%s4 + $0x28] sm:$0xf]
        %v297 = vld [vmem:[%s4 + $0x2c] sm:$0xf]
        %v298 = vld [vmem:[%s4 + $0x30] sm:$0xf]
        %v299 = vld [vmem:[%s4 + $0x34] sm:$0xf]
        %v300 = vld [vmem:[%s4 + $0x38] sm:$0xf]
        %v301 = vld [vmem:[%s4 + $0x3c] sm:$0xf]
        %v302 = vld [vmem:[%s4 + $0x40] sm:$0xf]
        %v303 = vld [vmem:[%s4 + $0x44] sm:$0xf]
        %v304 = vld [vmem:[%s4 + $0x48] sm:$0xf]
        %v305 = vld [vmem:[%s4 + $0x4c] sm:$0xf]
        %v306 = vld [vmem:[%s4 + $0x50] sm:$0xf]
        %v307 = vld [vmem:[%s4 + $0x54] sm:$0xf]
        %v308 = vld [vmem:[%s4 + $0x58] sm:$0xf]
        %v309 = vld [vmem:[%s4 + $0x5c] sm:$0xf]
        %v310 = vld [vmem:[%s4 + $0x60] sm:$0xf]
        %v311 = vld [vmem:[%s4 + $0x64] sm:$0xf]
        %v312 = vld [vmem:[%s4 + $0x68] sm:$0xf]
        %v313 = vld [vmem:[%s4 + $0x6c] sm:$0xf]
        %v314 = vld [vmem:[%s4 + $0x70] sm:$0xf]
        %v315 = vld [vmem:[%s4 + $0x74] sm:$0xf]
        %v316 = vld [vmem:[%s4 + $0x78] sm:$0xf]
        %v317 = vld [vmem:[%s4 + $0x7c] sm:$0xf]
        %v350 = vunpack.c.l.b16 %v286
        %v351 = vunpack.c.l.b16 %v287
        %v352 = vunpack.c.l.b16 %v288
        %v353 = vunpack.c.l.b16 %v289
        %v354 = vunpack.c.l.b16 %v290
        %v355 = vunpack.c.l.b16 %v291
        %v356 = vunpack.c.l.b16 %v292
        %v357 = vunpack.c.l.b16 %v293
        %v358 = vunpack.c.l.b16 %v294
        %v359 = vunpack.c.l.b16 %v295
        %v360 = vunpack.c.l.b16 %v296
        %v361 = vunpack.c.l.b16 %v297
        %v362 = vunpack.c.l.b16 %v298
        %v363 = vunpack.c.l.b16 %v299
        %v364 = vunpack.c.l.b16 %v300
        %v365 = vunpack.c.l.b16 %v301
        %v366 = vunpack.c.l.b16 %v302
        %v367 = vunpack.c.l.b16 %v303
        %v368 = vunpack.c.l.b16 %v304
        %v369 = vunpack.c.l.b16 %v305
        %v370 = vunpack.c.l.b16 %v306
        %v371 = vunpack.c.l.b16 %v307
        %v372 = vunpack.c.l.b16 %v308
        %v373 = vunpack.c.l.b16 %v309
        %v374 = vunpack.c.l.b16 %v310
        %v375 = vunpack.c.l.b16 %v311
        %v376 = vunpack.c.l.b16 %v312
        %v377 = vunpack.c.l.b16 %v313
        %v378 = vunpack.c.l.b16 %v314
        %v379 = vunpack.c.l.b16 %v315
        %v380 = vunpack.c.l.b16 %v316
        %v381 = vunpack.c.l.b16 %v317
        %v382 = vpack.c.b16 %v351, %v350
        %v383 = vpack.c.b16 %v353, %v352
        %v384 = vpack.c.b16 %v355, %v354
        %v385 = vpack.c.b16 %v357, %v356
        %v386 = vpack.c.b16 %v359, %v358
        %v387 = vpack.c.b16 %v361, %v360
        %v388 = vpack.c.b16 %v363, %v362
        %v389 = vpack.c.b16 %v365, %v364
        %v390 = vpack.c.b16 %v367, %v366
        %v391 = vpack.c.b16 %v369, %v368
        %v392 = vpack.c.b16 %v371, %v370
        %v393 = vpack.c.b16 %v373, %v372
        %v394 = vpack.c.b16 %v375, %v374
        %v395 = vpack.c.b16 %v377, %v376
        %v396 = vpack.c.b16 %v379, %v378
        %v397 = vpack.c.b16 %v381, %v380
        %414 = vmatpush.bf16.msra.mxu0 %v389
        %415 = vmatpush.bf16.msra.mxu0 %v388
        %416 = vmatpush.bf16.msra.mxu0 %v387
        %417 = vmatpush.bf16.msra.mxu0 %v386
        %418 = vmatpush.bf16.msra.mxu0 %v385
        %419 = vmatpush.bf16.msra.mxu0 %v384
        %420 = vmatpush.bf16.msra.mxu0 %v383
        %421 = vmatpush.bf16.msra.mxu0 %v382
        %422 = vmatmul.bf16.gmra.mxu0 %v284
        %v423 = vpop.f32.mrf.mxu0
        %v424 = vadd.f32 0.0, %v423
        %v425 = vpop.f32.mrf.mxu0
        %426 = vdwg.mxu0
        %427 = vmatpush.bf16.msra.mxu0 %v397
        %428 = vmatpush.bf16.msra.mxu0 %v396
        %429 = vmatpush.bf16.msra.mxu0 %v395
        %430 = vmatpush.bf16.msra.mxu0 %v394
        %431 = vmatpush.bf16.msra.mxu0 %v393
        %432 = vmatpush.bf16.msra.mxu0 %v392
        %433 = vmatpush.bf16.msra.mxu0 %v391
        %434 = vmatpush.bf16.msra.mxu0 %v390
        %435 = vmatmul.bf16.gmra.mxu0 %v285
        %v436 = vpop.f32.mrf.mxu0
        %v437 = vadd.f32 %v424, %v436
        %v438 = vpop.f32.mrf.mxu0
        %439 = vdwg.mxu0
        %vm440 = vcmask 261120
        %441 = vst.msk [vmem:[%s254] sm:$0xff] %vm440, %v437
        %v442 = vld [vmem:[%s262] sm:$0xff]
        %443 = vset.pattern.permute.xlu0 0
        %444 = vperm.xlu0 %443, %v442
        %v445 = vpop.permute.xlu0 %444
        %vm446 = vcmp.eq.s32.totalorder %v445, %v272
        %vm447 = vcmp.eq.s32.totalorder %v445, %v273
        %v448 = vsel %vm446, 1, 0
        %v449 = vsel %vm447, 1, 0
        %v450 = vcvt.s32.f32 %v448
        %v451 = vcvt.s32.f32 %v449
        %v452 = vpack.c.bf16 %v450, %v450
        %v453 = vpack.c.bf16 %v451, %v451
        %v454 = vld [vmem:[%s4] sm:$0xf]
        %v455 = vld [vmem:[%s4 + $0x4] sm:$0xf]
        %v456 = vld [vmem:[%s4 + $0x8] sm:$0xf]
        %v457 = vld [vmem:[%s4 + $0xc] sm:$0xf]
        %v458 = vld [vmem:[%s4 + $0x10] sm:$0xf]
        %v459 = vld [vmem:[%s4 + $0x14] sm:$0xf]
        %v460 = vld [vmem:[%s4 + $0x18] sm:$0xf]
        %v461 = vld [vmem:[%s4 + $0x1c] sm:$0xf]
        %v462 = vld [vmem:[%s4 + $0x20] sm:$0xf]
        %v463 = vld [vmem:[%s4 + $0x24] sm:$0xf]
        %v464 = vld [vmem:[%s4 + $0x28] sm:$0xf]
        %v465 = vld [vmem:[%s4 + $0x2c] sm:$0xf]
        %v466 = vld [vmem:[%s4 + $0x30] sm:$0xf]
        %v467 = vld [vmem:[%s4 + $0x34] sm:$0xf]
        %v468 = vld [vmem:[%s4 + $0x38] sm:$0xf]
        %v469 = vld [vmem:[%s4 + $0x3c] sm:$0xf]
        %v470 = vld [vmem:[%s4 + $0x40] sm:$0xf]
        %v471 = vld [vmem:[%s4 + $0x44] sm:$0xf]
        %v472 = vld [vmem:[%s4 + $0x48] sm:$0xf]
        %v473 = vld [vmem:[%s4 + $0x4c] sm:$0xf]
        %v474 = vld [vmem:[%s4 + $0x50] sm:$0xf]
        %v475 = vld [vmem:[%s4 + $0x54] sm:$0xf]
        %v476 = vld [vmem:[%s4 + $0x58] sm:$0xf]
        %v477 = vld [vmem:[%s4 + $0x5c] sm:$0xf]
        %v478 = vld [vmem:[%s4 + $0x60] sm:$0xf]
        %v479 = vld [vmem:[%s4 + $0x64] sm:$0xf]
        %v480 = vld [vmem:[%s4 + $0x68] sm:$0xf]
        %v481 = vld [vmem:[%s4 + $0x6c] sm:$0xf]
        %v482 = vld [vmem:[%s4 + $0x70] sm:$0xf]
        %v483 = vld [vmem:[%s4 + $0x74] sm:$0xf]
        %v484 = vld [vmem:[%s4 + $0x78] sm:$0xf]
        %v485 = vld [vmem:[%s4 + $0x7c] sm:$0xf]
        %v518 = vunpack.c.l.b16 %v454
        %v519 = vunpack.c.l.b16 %v455
        %v520 = vunpack.c.l.b16 %v456
        %v521 = vunpack.c.l.b16 %v457
        %v522 = vunpack.c.l.b16 %v458
        %v523 = vunpack.c.l.b16 %v459
        %v524 = vunpack.c.l.b16 %v460
        %v525 = vunpack.c.l.b16 %v461
        %v526 = vunpack.c.l.b16 %v462
        %v527 = vunpack.c.l.b16 %v463
        %v528 = vunpack.c.l.b16 %v464
        %v529 = vunpack.c.l.b16 %v465
        %v530 = vunpack.c.l.b16 %v466
        %v531 = vunpack.c.l.b16 %v467
        %v532 = vunpack.c.l.b16 %v468
        %v533 = vunpack.c.l.b16 %v469
        %v534 = vunpack.c.l.b16 %v470
        %v535 = vunpack.c.l.b16 %v471
        %v536 = vunpack.c.l.b16 %v472
        %v537 = vunpack.c.l.b16 %v473
        %v538 = vunpack.c.l.b16 %v474
        %v539 = vunpack.c.l.b16 %v475
        %v540 = vunpack.c.l.b16 %v476
        %v541 = vunpack.c.l.b16 %v477
        %v542 = vunpack.c.l.b16 %v478
        %v543 = vunpack.c.l.b16 %v479
        %v544 = vunpack.c.l.b16 %v480
        %v545 = vunpack.c.l.b16 %v481
        %v546 = vunpack.c.l.b16 %v482
        %v547 = vunpack.c.l.b16 %v483
        %v548 = vunpack.c.l.b16 %v484
        %v549 = vunpack.c.l.b16 %v485
        %v550 = vpack.c.b16 %v519, %v518
        %v551 = vpack.c.b16 %v521, %v520
        %v552 = vpack.c.b16 %v523, %v522
        %v553 = vpack.c.b16 %v525, %v524
        %v554 = vpack.c.b16 %v527, %v526
        %v555 = vpack.c.b16 %v529, %v528
        %v556 = vpack.c.b16 %v531, %v530
        %v557 = vpack.c.b16 %v533, %v532
        %v558 = vpack.c.b16 %v535, %v534
        %v559 = vpack.c.b16 %v537, %v536
        %v560 = vpack.c.b16 %v539, %v538
        %v561 = vpack.c.b16 %v541, %v540
        %v562 = vpack.c.b16 %v543, %v542
        %v563 = vpack.c.b16 %v545, %v544
        %v564 = vpack.c.b16 %v547, %v546
        %v565 = vpack.c.b16 %v549, %v548
        %582 = vmatpush.bf16.msra.mxu0 %v557
        %583 = vmatpush.bf16.msra.mxu0 %v556
        %584 = vmatpush.bf16.msra.mxu0 %v555
        %585 = vmatpush.bf16.msra.mxu0 %v554
        %586 = vmatpush.bf16.msra.mxu0 %v553
        %587 = vmatpush.bf16.msra.mxu0 %v552
        %588 = vmatpush.bf16.msra.mxu0 %v551
        %589 = vmatpush.bf16.msra.mxu0 %v550
        %590 = vmatmul.bf16.gmra.mxu0 %v452
        %v591 = vpop.f32.mrf.mxu0
        %v592 = vadd.f32 0.0, %v591
        %v593 = vpop.f32.mrf.mxu0
        %594 = vdwg.mxu0
        %595 = vmatpush.bf16.msra.mxu0 %v565
        %596 = vmatpush.bf16.msra.mxu0 %v564
        %597 = vmatpush.bf16.msra.mxu0 %v563
        %598 = vmatpush.bf16.msra.mxu0 %v562
        %599 = vmatpush.bf16.msra.mxu0 %v561
        %600 = vmatpush.bf16.msra.mxu0 %v560
        %601 = vmatpush.bf16.msra.mxu0 %v559
        %602 = vmatpush.bf16.msra.mxu0 %v558
        %603 = vmatmul.bf16.gmra.mxu0 %v453
        %v604 = vpop.f32.mrf.mxu0
        %v605 = vadd.f32 %v592, %v604
        %v606 = vpop.f32.mrf.mxu0
        %607 = vdwg.mxu0
        %609 = vrot.lane.b32.xlu0 %v605, 32
        %v610 = vpop.permute.xlu0 %609
        %vm612 = vcmask 523520
        %613 = vst.msk [vmem:[%s254] sm:$0xff] %vm612, %v610
        %v614 = vld [vmem:[%s266] sm:$0xff]
        %615 = vset.pattern.permute.xlu0 0
        %616 = vperm.xlu0 %615, %v614
        %v617 = vpop.permute.xlu0 %616
        %vm618 = vcmp.eq.s32.totalorder %v617, %v272
        %vm619 = vcmp.eq.s32.totalorder %v617, %v273
        %v620 = vsel %vm618, 1, 0
        %v621 = vsel %vm619, 1, 0
        %v622 = vcvt.s32.f32 %v620
        %v623 = vcvt.s32.f32 %v621
        %v624 = vpack.c.bf16 %v622, %v622
        %v625 = vpack.c.bf16 %v623, %v623
        %v626 = vld [vmem:[%s4] sm:$0xf]
        %v627 = vld [vmem:[%s4 + $0x4] sm:$0xf]
        %v628 = vld [vmem:[%s4 + $0x8] sm:$0xf]
        %v629 = vld [vmem:[%s4 + $0xc] sm:$0xf]
        %v630 = vld [vmem:[%s4 + $0x10] sm:$0xf]
        %v631 = vld [vmem:[%s4 + $0x14] sm:$0xf]
        %v632 = vld [vmem:[%s4 + $0x18] sm:$0xf]
        %v633 = vld [vmem:[%s4 + $0x1c] sm:$0xf]
        %v634 = vld [vmem:[%s4 + $0x20] sm:$0xf]
        %v635 = vld [vmem:[%s4 + $0x24] sm:$0xf]
        %v636 = vld [vmem:[%s4 + $0x28] sm:$0xf]
        %v637 = vld [vmem:[%s4 + $0x2c] sm:$0xf]
        %v638 = vld [vmem:[%s4 + $0x30] sm:$0xf]
        %v639 = vld [vmem:[%s4 + $0x34] sm:$0xf]
        %v640 = vld [vmem:[%s4 + $0x38] sm:$0xf]
        %v641 = vld [vmem:[%s4 + $0x3c] sm:$0xf]
        %v642 = vld [vmem:[%s4 + $0x40] sm:$0xf]
        %v643 = vld [vmem:[%s4 + $0x44] sm:$0xf]
        %v644 = vld [vmem:[%s4 + $0x48] sm:$0xf]
        %v645 = vld [vmem:[%s4 + $0x4c] sm:$0xf]
        %v646 = vld [vmem:[%s4 + $0x50] sm:$0xf]
        %v647 = vld [vmem:[%s4 + $0x54] sm:$0xf]
        %v648 = vld [vmem:[%s4 + $0x58] sm:$0xf]
        %v649 = vld [vmem:[%s4 + $0x5c] sm:$0xf]
        %v650 = vld [vmem:[%s4 + $0x60] sm:$0xf]
        %v651 = vld [vmem:[%s4 + $0x64] sm:$0xf]
        %v652 = vld [vmem:[%s4 + $0x68] sm:$0xf]
        %v653 = vld [vmem:[%s4 + $0x6c] sm:$0xf]
        %v654 = vld [vmem:[%s4 + $0x70] sm:$0xf]
        %v655 = vld [vmem:[%s4 + $0x74] sm:$0xf]
        %v656 = vld [vmem:[%s4 + $0x78] sm:$0xf]
        %v657 = vld [vmem:[%s4 + $0x7c] sm:$0xf]
        %v690 = vunpack.c.l.b16 %v626
        %v691 = vunpack.c.l.b16 %v627
        %v692 = vunpack.c.l.b16 %v628
        %v693 = vunpack.c.l.b16 %v629
        %v694 = vunpack.c.l.b16 %v630
        %v695 = vunpack.c.l.b16 %v631
        %v696 = vunpack.c.l.b16 %v632
        %v697 = vunpack.c.l.b16 %v633
        %v698 = vunpack.c.l.b16 %v634
        %v699 = vunpack.c.l.b16 %v635
        %v700 = vunpack.c.l.b16 %v636
        %v701 = vunpack.c.l.b16 %v637
        %v702 = vunpack.c.l.b16 %v638
        %v703 = vunpack.c.l.b16 %v639
        %v704 = vunpack.c.l.b16 %v640
        %v705 = vunpack.c.l.b16 %v641
        %v706 = vunpack.c.l.b16 %v642
        %v707 = vunpack.c.l.b16 %v643
        %v708 = vunpack.c.l.b16 %v644
        %v709 = vunpack.c.l.b16 %v645
        %v710 = vunpack.c.l.b16 %v646
        %v711 = vunpack.c.l.b16 %v647
        %v712 = vunpack.c.l.b16 %v648
        %v713 = vunpack.c.l.b16 %v649
        %v714 = vunpack.c.l.b16 %v650
        %v715 = vunpack.c.l.b16 %v651
        %v716 = vunpack.c.l.b16 %v652
        %v717 = vunpack.c.l.b16 %v653
        %v718 = vunpack.c.l.b16 %v654
        %v719 = vunpack.c.l.b16 %v655
        %v720 = vunpack.c.l.b16 %v656
        %v721 = vunpack.c.l.b16 %v657
        %v722 = vpack.c.b16 %v691, %v690
        %v723 = vpack.c.b16 %v693, %v692
        %v724 = vpack.c.b16 %v695, %v694
        %v725 = vpack.c.b16 %v697, %v696
        %v726 = vpack.c.b16 %v699, %v698
        %v727 = vpack.c.b16 %v701, %v700
        %v728 = vpack.c.b16 %v703, %v702
        %v729 = vpack.c.b16 %v705, %v704
        %v730 = vpack.c.b16 %v707, %v706
        %v731 = vpack.c.b16 %v709, %v708
        %v732 = vpack.c.b16 %v711, %v710
        %v733 = vpack.c.b16 %v713, %v712
        %v734 = vpack.c.b16 %v715, %v714
        %v735 = vpack.c.b16 %v717, %v716
        %v736 = vpack.c.b16 %v719, %v718
        %v737 = vpack.c.b16 %v721, %v720
        %754 = vmatpush.bf16.msra.mxu0 %v729
        %755 = vmatpush.bf16.msra.mxu0 %v728
        %756 = vmatpush.bf16.msra.mxu0 %v727
        %757 = vmatpush.bf16.msra.mxu0 %v726
        %758 = vmatpush.bf16.msra.mxu0 %v725
        %759 = vmatpush.bf16.msra.mxu0 %v724
        %760 = vmatpush.bf16.msra.mxu0 %v723
        %761 = vmatpush.bf16.msra.mxu0 %v722
        %762 = vmatmul.bf16.gmra.mxu0 %v624
        %v763 = vpop.f32.mrf.mxu0
        %v764 = vadd.f32 0.0, %v763
        %v765 = vpop.f32.mrf.mxu0
        %766 = vdwg.mxu0
        %767 = vmatpush.bf16.msra.mxu0 %v737
        %768 = vmatpush.bf16.msra.mxu0 %v736
        %769 = vmatpush.bf16.msra.mxu0 %v735
        %770 = vmatpush.bf16.msra.mxu0 %v734
        %771 = vmatpush.bf16.msra.mxu0 %v733
        %772 = vmatpush.bf16.msra.mxu0 %v732
        %773 = vmatpush.bf16.msra.mxu0 %v731
        %774 = vmatpush.bf16.msra.mxu0 %v730
        %775 = vmatmul.bf16.gmra.mxu0 %v625
        %v776 = vpop.f32.mrf.mxu0
        %v777 = vadd.f32 %v764, %v776
        %v778 = vpop.f32.mrf.mxu0
        %779 = vdwg.mxu0
        %781 = vrot.lane.b32.xlu0 %v777, 64
        %v782 = vpop.permute.xlu0 %781
        %vm784 = vcmask 785920
        %785 = vst.msk [vmem:[%s254] sm:$0xff] %vm784, %v782
        %v786 = vld [vmem:[%s270] sm:$0xff]
        %787 = vset.pattern.permute.xlu0 0
        %788 = vperm.xlu0 %787, %v786
        %v789 = vpop.permute.xlu0 %788
        %vm790 = vcmp.eq.s32.totalorder %v789, %v272
        %vm791 = vcmp.eq.s32.totalorder %v789, %v273
        %v792 = vsel %vm790, 1, 0
        %v793 = vsel %vm791, 1, 0
        %v794 = vcvt.s32.f32 %v792
        %v795 = vcvt.s32.f32 %v793
        %v796 = vpack.c.bf16 %v794, %v794
        %v797 = vpack.c.bf16 %v795, %v795
        %v798 = vld [vmem:[%s4] sm:$0xf]
        %v799 = vld [vmem:[%s4 + $0x4] sm:$0xf]
        %v800 = vld [vmem:[%s4 + $0x8] sm:$0xf]
        %v801 = vld [vmem:[%s4 + $0xc] sm:$0xf]
        %v802 = vld [vmem:[%s4 + $0x10] sm:$0xf]
        %v803 = vld [vmem:[%s4 + $0x14] sm:$0xf]
        %v804 = vld [vmem:[%s4 + $0x18] sm:$0xf]
        %v805 = vld [vmem:[%s4 + $0x1c] sm:$0xf]
        %v806 = vld [vmem:[%s4 + $0x20] sm:$0xf]
        %v807 = vld [vmem:[%s4 + $0x24] sm:$0xf]
        %v808 = vld [vmem:[%s4 + $0x28] sm:$0xf]
        %v809 = vld [vmem:[%s4 + $0x2c] sm:$0xf]
        %v810 = vld [vmem:[%s4 + $0x30] sm:$0xf]
        %v811 = vld [vmem:[%s4 + $0x34] sm:$0xf]
        %v812 = vld [vmem:[%s4 + $0x38] sm:$0xf]
        %v813 = vld [vmem:[%s4 + $0x3c] sm:$0xf]
        %v814 = vld [vmem:[%s4 + $0x40] sm:$0xf]
        %v815 = vld [vmem:[%s4 + $0x44] sm:$0xf]
        %v816 = vld [vmem:[%s4 + $0x48] sm:$0xf]
        %v817 = vld [vmem:[%s4 + $0x4c] sm:$0xf]
        %v818 = vld [vmem:[%s4 + $0x50] sm:$0xf]
        %v819 = vld [vmem:[%s4 + $0x54] sm:$0xf]
        %v820 = vld [vmem:[%s4 + $0x58] sm:$0xf]
        %v821 = vld [vmem:[%s4 + $0x5c] sm:$0xf]
        %v822 = vld [vmem:[%s4 + $0x60] sm:$0xf]
        %v823 = vld [vmem:[%s4 + $0x64] sm:$0xf]
        %v824 = vld [vmem:[%s4 + $0x68] sm:$0xf]
        %v825 = vld [vmem:[%s4 + $0x6c] sm:$0xf]
        %v826 = vld [vmem:[%s4 + $0x70] sm:$0xf]
        %v827 = vld [vmem:[%s4 + $0x74] sm:$0xf]
        %v828 = vld [vmem:[%s4 + $0x78] sm:$0xf]
        %v829 = vld [vmem:[%s4 + $0x7c] sm:$0xf]
        %v862 = vunpack.c.l.b16 %v798
        %v863 = vunpack.c.l.b16 %v799
        %v864 = vunpack.c.l.b16 %v800
        %v865 = vunpack.c.l.b16 %v801
        %v866 = vunpack.c.l.b16 %v802
        %v867 = vunpack.c.l.b16 %v803
        %v868 = vunpack.c.l.b16 %v804
        %v869 = vunpack.c.l.b16 %v805
        %v870 = vunpack.c.l.b16 %v806
        %v871 = vunpack.c.l.b16 %v807
        %v872 = vunpack.c.l.b16 %v808
        %v873 = vunpack.c.l.b16 %v809
        %v874 = vunpack.c.l.b16 %v810
        %v875 = vunpack.c.l.b16 %v811
        %v876 = vunpack.c.l.b16 %v812
        %v877 = vunpack.c.l.b16 %v813
        %v878 = vunpack.c.l.b16 %v814
        %v879 = vunpack.c.l.b16 %v815
        %v880 = vunpack.c.l.b16 %v816
        %v881 = vunpack.c.l.b16 %v817
        %v882 = vunpack.c.l.b16 %v818
        %v883 = vunpack.c.l.b16 %v819
        %v884 = vunpack.c.l.b16 %v820
        %v885 = vunpack.c.l.b16 %v821
        %v886 = vunpack.c.l.b16 %v822
        %v887 = vunpack.c.l.b16 %v823
        %v888 = vunpack.c.l.b16 %v824
        %v889 = vunpack.c.l.b16 %v825
        %v890 = vunpack.c.l.b16 %v826
        %v891 = vunpack.c.l.b16 %v827
        %v892 = vunpack.c.l.b16 %v828
        %v893 = vunpack.c.l.b16 %v829
        %v894 = vpack.c.b16 %v863, %v862
        %v895 = vpack.c.b16 %v865, %v864
        %v896 = vpack.c.b16 %v867, %v866
        %v897 = vpack.c.b16 %v869, %v868
        %v898 = vpack.c.b16 %v871, %v870
        %v899 = vpack.c.b16 %v873, %v872
        %v900 = vpack.c.b16 %v875, %v874
        %v901 = vpack.c.b16 %v877, %v876
        %v902 = vpack.c.b16 %v879, %v878
        %v903 = vpack.c.b16 %v881, %v880
        %v904 = vpack.c.b16 %v883, %v882
        %v905 = vpack.c.b16 %v885, %v884
        %v906 = vpack.c.b16 %v887, %v886
        %v907 = vpack.c.b16 %v889, %v888
        %v908 = vpack.c.b16 %v891, %v890
        %v909 = vpack.c.b16 %v893, %v892
        %926 = vmatpush.bf16.msra.mxu0 %v901
        %927 = vmatpush.bf16.msra.mxu0 %v900
        %928 = vmatpush.bf16.msra.mxu0 %v899
        %929 = vmatpush.bf16.msra.mxu0 %v898
        %930 = vmatpush.bf16.msra.mxu0 %v897
        %931 = vmatpush.bf16.msra.mxu0 %v896
        %932 = vmatpush.bf16.msra.mxu0 %v895
        %933 = vmatpush.bf16.msra.mxu0 %v894
        %934 = vmatmul.bf16.gmra.mxu0 %v796
        %v935 = vpop.f32.mrf.mxu0
        %v936 = vadd.f32 0.0, %v935
        %v937 = vpop.f32.mrf.mxu0
        %938 = vdwg.mxu0
        %939 = vmatpush.bf16.msra.mxu0 %v909
        %940 = vmatpush.bf16.msra.mxu0 %v908
        %941 = vmatpush.bf16.msra.mxu0 %v907
        %942 = vmatpush.bf16.msra.mxu0 %v906
        %943 = vmatpush.bf16.msra.mxu0 %v905
        %944 = vmatpush.bf16.msra.mxu0 %v904
        %945 = vmatpush.bf16.msra.mxu0 %v903
        %946 = vmatpush.bf16.msra.mxu0 %v902
        %947 = vmatmul.bf16.gmra.mxu0 %v797
        %v948 = vpop.f32.mrf.mxu0
        %v949 = vadd.f32 %v936, %v948
        %v950 = vpop.f32.mrf.mxu0
        %951 = vdwg.mxu0
        %953 = vrot.lane.b32.xlu0 %v949, 96
        %v954 = vpop.permute.xlu0 %953
        %vm956 = vcmask 1048320
        %957 = vst.msk [vmem:[%s254] sm:$0xff] %vm956, %v954
        %s958 = sand.u32 %s152, 1
        %s959 = scalar_lea.sflag [#allocation3], %s958
        %s960 = sand.u32 %s152, 1
        %s961 = smul.addr %s960, 8
        %s962 = scalar_lea.vmem [#allocation2], %s961
        // Predicated region
        $region41: #{tpu_custom_call.1} parent=39 // pred_check
          %p963 = pneg %p162
        $region42: #{tpu_custom_call.1} parent=39 // pred_check_branch
          %965 = sbr.rel (%p963) target = $region44
        $region43: #{tpu_custom_call.1} parent=39 // pred_region
          %967 = vsyncadd %s959, 0
          %s968 = smul.addr %s19, 8
          %s969 = scalar_lea.hbm %s5, %s968
          %s971 = sshll.u32 %s962, 4
          %s972 = int_to_ptr.vmem [resolvable:$true] %s971
          %s973 = sshll.u32 %s969, 4
          %s974 = int_to_ptr.hbm [resolvable:$true] %s973
          %976 = dma.vmem_to_hbm [thread:$0]  %s972, 128, %s974, %s959
        $region44: #{tpu_custom_call.1} parent=39 // pred_fallthru
          _
      $region40: #{tpu_custom_call.1} parent=5 // pred_fallthru
        _
      %p977 = scmp.le.s32.totalorder 2, %s14
      // Predicated region
      $region45: #{tpu_custom_call.1} parent=5 // pred_check
        %p978 = pneg %p977
      $region46: #{tpu_custom_call.1} parent=5 // pred_check_branch
        %980 = sbr.rel (%p978) target = $region48
      $region47: #{tpu_custom_call.1} parent=5 // pred_region
        %s981 = ssub.s32 %s14, 2
        // Predicated region
        $region49: #{tpu_custom_call.1} parent=47 // pred_check
          %p982 = pneg %p168
        $region50: #{tpu_custom_call.1} parent=47 // pred_check_branch
          %984 = sbr.rel (%p982) target = $region52
        $region51: #{tpu_custom_call.1} parent=47 // pred_region
          %s985 = sand.u32 %s153, 1
          %s986 = scalar_lea.sflag [#allocation3], %s985
          %s987 = sand.u32 %s153, 1
          %s988 = smul.addr %s987, 8
          %s989 = scalar_lea.vmem [#allocation2], %s988
          %991 = dma.done %s986, 128
        $region52: #{tpu_custom_call.1} parent=47 // pred_fallthru
          _
      $region48: #{tpu_custom_call.1} parent=5 // pred_fallthru
        _
    $region6: #{tpu_custom_call.1} parent=1 // loop_footer
      %s18 = sadd.s32 1, %s14
    $region7: #{tpu_custom_call.1} parent=1 // loop_footer_branch
      %13 = sbr.rel target = $region3
    $region8: #{tpu_custom_call.1} parent=1 // loop_exit
      _
    %992 = vsyncpa [#allocation3], 1
    %s993 = scalar_lea.sflag [#allocation3], 1
    %994 = vsyncpa %s993, 1

// kernel: tpu_custom_call.1
$region0: #{tpu_custom_call.1}
  #allocation0 [shape = 'u32[]', space=smem, size = 0x4, offset = 0x4, fixed_abs, tag = 'smem constant byte address 0x4 - core index']
  #allocation1 [shape = 'u32[72,128]{1,0:T(1,128)}', space=vmem, size = 0x9000, scoped, tag = 'internal scratch']
  %s0 = inlined_call_operand.vmem [shape: s32[16,1], index: 0, kind: input, shape index: {}]
  %s1 = inlined_call_operand.vmem [shape: s32[16,1], index: 1, kind: input, shape index: {}]
  %s2 = inlined_call_operand.vmem [shape: s32[16,1], index: 2, kind: input, shape index: {}]
  %s3 = inlined_call_operand.vmem [shape: s32[16,1], index: 3, kind: input, shape index: {}]
  %s4 = inlined_call_operand.vmem [shape: bf16[256,32], index: 4, kind: input, shape index: {}]
  %s5 = inlined_call_operand.hbm [shape: f32[16,128], index: 5, kind: output, shape index: {}]
  %s6 = sld [smem:[#allocation0]]
  $region53: #{tpu_custom_call.1} parent=0
    _
  %s8 = ssub.s32 1, %s6
  %s9 = scalar_select 0, %s8, %s6
  $region1: #{tpu_custom_call.1} parent=0
    #allocation2 [shape = 'u8[8192]{0}', space=vmem, size = 0x2000, scoped, tag = 'output window, operand 0']
    #allocation3 [shape = 's32[2]{0}', space=sflag, size = 0x8, scoped, tag = 'scoped memory for tpu_custom_call.1']
    %10 = vsyncpa [#allocation3], 0
    %s11 = scalar_lea.sflag [#allocation3], 1
    %12 = vsyncpa %s11, 0
    loop: start=0, step=1, limit=4
    $region2: #{tpu_custom_call.1} parent=1 // loop_pre_header
      _
    $region3: #{tpu_custom_call.1} parent=1 // loop_header
      %s14 = sphi 0, %s18
      %p15 = scmp.ge.s32.totalorder %s14, 4
      %s24 = sphi 0, %s26
      %s27 = sphi 0, %s24
      %s28 = sphi 0, %s27
      %s44 = sphi 0, %s28
      %s50 = sphi 0, %s52
      %s53 = sphi 0, %s50
      %s54 = sphi 0, %s53
      %s70 = sphi 0, %s54
      %s76 = sphi 0, %s78
      %s79 = sphi 0, %s76
      %s80 = sphi 0, %s79
      %s96 = sphi 0, %s80
      %s102 = sphi 0, %s104
      %s105 = sphi 0, %s102
      %s106 = sphi 0, %s105
      %s122 = sphi 0, %s106
      %s126 = sphi 0, %s126
      %s128 = sphi 0, %s126
      %s129 = sphi 0, %s128
      %s143 = sphi 0, %s129
      %s149 = sphi 0, %s151
      %s152 = sphi 0, %s149
      %s153 = sphi 0, %s152
      %s169 = sphi 0, %s153
    $region4: #{tpu_custom_call.1} parent=1 // loop_header_branch
      %17 = sbr.rel (%p15) target = $region8
    $region5: #{tpu_custom_call.1} parent=1 // loop_body
      %s19 = ssub.s32 %s14, 1
      %s20 = ssub.s32 %s14, 2
      %s21 = sadd.s32 %s14, 1
      %s22 = ssub.s32 %s14, %s21
      %p23 = scmp.eq.s32.totalorder %s22, 0
      %s25 = sadd.s32 %s24, 1
      %s26 = scalar_select %p23, %s24, %s25
      %p29 = pneg %p23
      %p30 = scmp.eq.s32.totalorder %s14, 1
      %p31 = por %p29, %p30
      %p32 = scmp.ne.s32.totalorder %s24, %s27
      %p33 = scmp.eq.s32.totalorder %s14, 0
      %p34 = por %p32, %p33
      %p35 = scmp.ne.s32.totalorder %s24, %s27
      %p36 = scmp.eq.s32.totalorder %s19, 1
      %p37 = por %p35, %p36
      %p38 = scmp.ne.s32.totalorder %s27, %s28
      %p39 = scmp.eq.s32.totalorder %s19, 0
      %p40 = por %p38, %p39
      %p41 = scmp.ne.s32.totalorder %s27, %s28
      %p42 = scmp.eq.s32.totalorder %s20, 1
      %p43 = por %p41, %p42
      %p45 = scmp.ne.s32.totalorder %s28, %s44
      %p46 = scmp.eq.s32.totalorder %s20, 0
      %p47 = por %p45, %p46
      %s48 = ssub.s32 %s14, %s21
      %p49 = scmp.eq.s32.totalorder %s48, 0
      %s51 = sadd.s32 %s50, 1
      %s52 = scalar_select %p49, %s50, %s51
      %p55 = pneg %p49
      %p56 = scmp.eq.s32.totalorder %s14, 1
      %p57 = por %p55, %p56
      %p58 = scmp.ne.s32.totalorder %s50, %s53
      %p59 = scmp.eq.s32.totalorder %s14, 0
      %p60 = por %p58, %p59
      %p61 = scmp.ne.s32.totalorder %s50, %s53
      %p62 = scmp.eq.s32.totalorder %s19, 1
      %p63 = por %p61, %p62
      %p64 = scmp.ne.s32.totalorder %s53, %s54
      %p65 = scmp.eq.s32.totalorder %s19, 0
      %p66 = por %p64, %p65
      %p67 = scmp.ne.s32.totalorder %s53, %s54
      %p68 = scmp.eq.s32.totalorder %s20, 1
      %p69 = por %p67, %p68
      %p71 = scmp.ne.s32.totalorder %s54, %s70
      %p72 = scmp.eq.s32.totalorder %s20, 0
      %p73 = por %p71, %p72
      %s74 = ssub.s32 %s14, %s21
      %p75 = scmp.eq.s32.totalorder %s74, 0
      %s77 = sadd.s32 %s76, 1
      %s78 = scalar_select %p75, %s76, %s77
      %p81 = pneg %p75
      %p82 = scmp.eq.s32.totalorder %s14, 1
      %p83 = por %p81, %p82
      %p84 = scmp.ne.s32.totalorder %s76, %s79
      %p85 = scmp.eq.s32.totalorder %s14, 0
      %p86 = por %p84, %p85
      %p87 = scmp.ne.s32.totalorder %s76, %s79
      %p88 = scmp.eq.s32.totalorder %s19, 1
      %p89 = por %p87, %p88
      %p90 = scmp.ne.s32.totalorder %s79, %s80
      %p91 = scmp.eq.s32.totalorder %s19, 0
      %p92 = por %p90, %p91
      %p93 = scmp.ne.s32.totalorder %s79, %s80
      %p94 = scmp.eq.s32.totalorder %s20, 1
      %p95 = por %p93, %p94
      %p97 = scmp.ne.s32.totalorder %s80, %s96
      %p98 = scmp.eq.s32.totalorder %s20, 0
      %p99 = por %p97, %p98
      %s100 = ssub.s32 %s14, %s21
      %p101 = scmp.eq.s32.totalorder %s100, 0
      %s103 = sadd.s32 %s102, 1
      %s104 = scalar_select %p101, %s102, %s103
      %p107 = pneg %p101
      %p108 = scmp.eq.s32.totalorder %s14, 1
      %p109 = por %p107, %p108
      %p110 = scmp.ne.s32.totalorder %s102, %s105
      %p111 = scmp.eq.s32.totalorder %s14, 0
      %p112 = por %p110, %p111
      %p113 = scmp.ne.s32.totalorder %s102, %s105
      %p114 = scmp.eq.s32.totalorder %s19, 1
      %p115 = por %p113, %p114
      %p116 = scmp.ne.s32.totalorder %s105, %s106
      %p117 = scmp.eq.s32.totalorder %s19, 0
      %p118 = por %p116, %p117
      %p119 = scmp.ne.s32.totalorder %s105, %s106
      %p120 = scmp.eq.s32.totalorder %s20, 1
      %p121 = por %p119, %p120
      %p123 = scmp.ne.s32.totalorder %s106, %s122
      %p124 = scmp.eq.s32.totalorder %s20, 0
      %p125 = por %p123, %p124
      %s127 = sadd.s32 %s126, 1
      %p130 = scmp.eq.s32.totalorder %s14, 1
      %p131 = scmp.ne.s32.totalorder %s126, %s128
      %p132 = scmp.eq.s32.totalorder %s14, 0
      %p133 = por %p131, %p132
      %p134 = scmp.ne.s32.totalorder %s126, %s128
      %p135 = scmp.eq.s32.totalorder %s19, 1
      %p136 = por %p134, %p135
      %p137 = scmp.ne.s32.totalorder %s128, %s129
      %p138 = scmp.eq.s32.totalorder %s19, 0
      %p139 = por %p137, %p138
      %p140 = scmp.ne.s32.totalorder %s128, %s129
      %p141 = scmp.eq.s32.totalorder %s20, 1
      %p142 = por %p140, %p141
      %p144 = scmp.ne.s32.totalorder %s129, %s143
      %p145 = scmp.eq.s32.totalorder %s20, 0
      %p146 = por %p144, %p145
      %s147 = ssub.s32 %s14, %s21
      %p148 = scmp.eq.s32.totalorder %s147, 0
      %s150 = sadd.s32 %s149, 1
      %s151 = scalar_select %p148, %s149, %s150
      %p154 = pneg %p148
      %p155 = scmp.eq.s32.totalorder %s14, 1
      %p156 = por %p154, %p155
      %p157 = scmp.ne.s32.totalorder %s149, %s152
      %p158 = scmp.eq.s32.totalorder %s14, 0
      %p159 = por %p157, %p158
      %p160 = scmp.ne.s32.totalorder %s149, %s152
      %p161 = scmp.eq.s32.totalorder %s19, 1
      %p162 = por %p160, %p161
      %p163 = scmp.ne.s32.totalorder %s152, %s153
      %p164 = scmp.eq.s32.totalorder %s19, 0
      %p165 = por %p163, %p164
      %p166 = scmp.ne.s32.totalorder %s152, %s153
      %p167 = scmp.eq.s32.totalorder %s20, 1
      %p168 = por %p166, %p167
      %p170 = scmp.ne.s32.totalorder %s153, %s169
      %p171 = scmp.eq.s32.totalorder %s20, 0
      %p172 = por %p170, %p171
      %p173 = scmp.le.s32.totalorder 1, %s14
      %p174 = scmp.lt.s32.totalorder %s14, 3
      %p175 = pnand %p173, %p174
      %p176 = pneg %p175
      // Predicated region
      $region9: #{tpu_custom_call.1} parent=5 // pred_check
        _
      $region10: #{tpu_custom_call.1} parent=5 // pred_check_branch
        %178 = sbr.rel (%p175) target = $region12
      $region11: #{tpu_custom_call.1} parent=5 // pred_region
        %s179 = ssub.s32 %s14, 1
        // Predicated region
        $region13: #{tpu_custom_call.1} parent=11 // pred_check
          %p180 = pneg %p139
        $region14: #{tpu_custom_call.1} parent=11 // pred_check_branch
          %182 = sbr.rel (%p180) target = $region16
        $region15: #{tpu_custom_call.1} parent=11 // pred_region
          _
        $region16: #{tpu_custom_call.1} parent=11 // pred_fallthru
          _
      $region12: #{tpu_custom_call.1} parent=5 // pred_fallthru
        _
      %p183 = scmp.lt.s32.totalorder %s14, 2
      // Predicated region
      $region17: #{tpu_custom_call.1} parent=5 // pred_check
        %p184 = pneg %p183
      $region18: #{tpu_custom_call.1} parent=5 // pred_check_branch
        %186 = sbr.rel (%p184) target = $region20
      $region19: #{tpu_custom_call.1} parent=5 // pred_region
        // Predicated region
        $region21: #{tpu_custom_call.1} parent=19 // pred_check
          %p187 = pneg %p34
        $region22: #{tpu_custom_call.1} parent=19 // pred_check_branch
          %189 = sbr.rel (%p187) target = $region24
        $region23: #{tpu_custom_call.1} parent=19 // pred_region
          %p190 = scmp.lt.s32.totalorder %s14, 1
          %s191 = scalar_select %p190, %s14, 1
          %s192 = smul.addr %s191, 8
          %s193 = scalar_lea.vmem %s0, %s192
        $region24: #{tpu_custom_call.1} parent=19 // pred_fallthru
          _
        // Predicated region
        $region25: #{tpu_custom_call.1} parent=19 // pred_check
          %p194 = pneg %p60
        $region26: #{tpu_custom_call.1} parent=19 // pred_check_branch
          %196 = sbr.rel (%p194) target = $region28
        $region27: #{tpu_custom_call.1} parent=19 // pred_region
          %p197 = scmp.lt.s32.totalorder %s14, 1
          %s198 = scalar_select %p197, %s14, 1
          %s199 = smul.addr %s198, 8
          %s200 = scalar_lea.vmem %s1, %s199
        $region28: #{tpu_custom_call.1} parent=19 // pred_fallthru
          _
        // Predicated region
        $region29: #{tpu_custom_call.1} parent=19 // pred_check
          %p201 = pneg %p86
        $region30: #{tpu_custom_call.1} parent=19 // pred_check_branch
          %203 = sbr.rel (%p201) target = $region32
        $region31: #{tpu_custom_call.1} parent=19 // pred_region
          %p204 = scmp.lt.s32.totalorder %s14, 1
          %s205 = scalar_select %p204, %s14, 1
          %s206 = smul.addr %s205, 8
          %s207 = scalar_lea.vmem %s2, %s206
        $region32: #{tpu_custom_call.1} parent=19 // pred_fallthru
          _
        // Predicated region
        $region33: #{tpu_custom_call.1} parent=19 // pred_check
          %p208 = pneg %p112
        $region34: #{tpu_custom_call.1} parent=19 // pred_check_branch
          %210 = sbr.rel (%p208) target = $region36
        $region35: #{tpu_custom_call.1} parent=19 // pred_region
          %p211 = scmp.lt.s32.totalorder %s14, 1
          %s212 = scalar_select %p211, %s14, 1
          %s213 = smul.addr %s212, 8
          %s214 = scalar_lea.vmem %s3, %s213
        $region36: #{tpu_custom_call.1} parent=19 // pred_fallthru
          _
      $region20: #{tpu_custom_call.1} parent=5 // pred_fallthru
        _
      %p215 = scmp.le.s32.totalorder 1, %s14
      %p216 = scmp.lt.s32.totalorder %s14, 3
      %p217 = pnand %p215, %p216
      %p218 = pneg %p217
      // Predicated region
      $region37: #{tpu_custom_call.1} parent=5 // pred_check
        _
      $region38: #{tpu_custom_call.1} parent=5 // pred_check_branch
        %220 = sbr.rel (%p217) target = $region40
      $region39: #{tpu_custom_call.1} parent=5 // pred_region
        %s221 = ssub.s32 %s14, 1
        %p222 = scmp.lt.s32.totalorder %s19, 1
        %s223 = scalar_select %p222, %s19, 1
        %s224 = smul.addr %s223, 8
        %s225 = scalar_lea.vmem %s0, %s224
        %p226 = pneg %p40
        %p227 = pneg %p37
        %p228 = scmp.lt.s32.totalorder %s19, 1
        %s229 = scalar_select %p228, %s19, 1
        %s230 = smul.addr %s229, 8
        %s231 = scalar_lea.vmem %s1, %s230
        %p232 = pneg %p66
        %p233 = pneg %p63
        %p234 = scmp.lt.s32.totalorder %s19, 1
        %s235 = scalar_select %p234, %s19, 1
        %s236 = smul.addr %s235, 8
        %s237 = scalar_lea.vmem %s2, %s236
        %p238 = pneg %p92
        %p239 = pneg %p89
        %p240 = scmp.lt.s32.totalorder %s19, 1
        %s241 = scalar_select %p240, %s19, 1
        %s242 = smul.addr %s241, 8
        %s243 = scalar_lea.vmem %s3, %s242
        %p244 = pneg %p118
        %p245 = pneg %p115
        %p246 = pneg %p139
        %p247 = pneg %p136
        %p248 = pneg %p165
        %p249 = pneg %p162
        %s250 = sand.u32 %s152, 1
        %s251 = scalar_lea.sflag [#allocation3], %s250
        %s252 = sand.u32 %s152, 1
        %s253 = smul.addr %s252, 8
        %s254 = scalar_lea.vmem [#allocation2], %s253
        %p255 = scmp.lt.s32.totalorder %s19, 1
        %s256 = scalar_select %p255, %s19, 1
        %s257 = smul.addr %s256, 8
        %s258 = scalar_lea.vmem %s0, %s257
        %p259 = scmp.lt.s32.totalorder %s19, 1
        %s260 = scalar_select %p259, %s19, 1
        %s261 = smul.addr %s260, 8
        %s262 = scalar_lea.vmem %s1, %s261
        %p263 = scmp.lt.s32.totalorder %s19, 1
        %s264 = scalar_select %p263, %s19, 1
        %s265 = smul.addr %s264, 8
        %s266 = scalar_lea.vmem %s2, %s265
        %p267 = scmp.lt.s32.totalorder %s19, 1
        %s268 = scalar_select %p267, %s19, 1
        %s269 = smul.addr %s268, 8
        %s270 = scalar_lea.vmem %s3, %s269
        %v271 = vlaneseq
        %v272 = vand.u32 %v271, 127
        %v273 = vadd.s32 %v272, 128
        %v274 = vld [vmem:[%s258] sm:$0xff]
        %275 = vset.pattern.permute.xlu0 0
        %276 = vperm.xlu0 %275, %v274
        %v277 = vpop.permute.xlu0 %276
        %vm278 = vcmp.eq.s32.totalorder %v277, %v272
        %vm279 = vcmp.eq.s32.totalorder %v277, %v273
        %v280 = vsel %vm278, 1, 0
        %v281 = vsel %vm279, 1, 0
        %v282 = vcvt.s32.f32 %v280
        %v283 = vcvt.s32.f32 %v281
        %v284 = vpack.c.bf16 %v282, %v282
        %v285 = vpack.c.bf16 %v283, %v283
        %v286 = vld [vmem:[%s4] sm:$0xf]
        %v287 = vld [vmem:[%s4 + $0x4] sm:$0xf]
        %v288 = vld [vmem:[%s4 + $0x8] sm:$0xf]
        %v289 = vld [vmem:[%s4 + $0xc] sm:$0xf]
        %v290 = vld [vmem:[%s4 + $0x10] sm:$0xf]
        %v291 = vld [vmem:[%s4 + $0x14] sm:$0xf]
        %v292 = vld [vmem:[%s4 + $0x18] sm:$0xf]
        %v293 = vld [vmem:[%s4 + $0x1c] sm:$0xf]
        %v294 = vld [vmem:[%s4 + $0x20] sm:$0xf]
        %v295 = vld [vmem:[%s4 + $0x24] sm:$0xf]
        %v296 = vld [vmem:[%s4 + $0x28] sm:$0xf]
        %v297 = vld [vmem:[%s4 + $0x2c] sm:$0xf]
        %v298 = vld [vmem:[%s4 + $0x30] sm:$0xf]
        %v299 = vld [vmem:[%s4 + $0x34] sm:$0xf]
        %v300 = vld [vmem:[%s4 + $0x38] sm:$0xf]
        %v301 = vld [vmem:[%s4 + $0x3c] sm:$0xf]
        %v302 = vld [vmem:[%s4 + $0x40] sm:$0xf]
        %v303 = vld [vmem:[%s4 + $0x44] sm:$0xf]
        %v304 = vld [vmem:[%s4 + $0x48] sm:$0xf]
        %v305 = vld [vmem:[%s4 + $0x4c] sm:$0xf]
        %v306 = vld [vmem:[%s4 + $0x50] sm:$0xf]
        %v307 = vld [vmem:[%s4 + $0x54] sm:$0xf]
        %v308 = vld [vmem:[%s4 + $0x58] sm:$0xf]
        %v309 = vld [vmem:[%s4 + $0x5c] sm:$0xf]
        %v310 = vld [vmem:[%s4 + $0x60] sm:$0xf]
        %v311 = vld [vmem:[%s4 + $0x64] sm:$0xf]
        %v312 = vld [vmem:[%s4 + $0x68] sm:$0xf]
        %v313 = vld [vmem:[%s4 + $0x6c] sm:$0xf]
        %v314 = vld [vmem:[%s4 + $0x70] sm:$0xf]
        %v315 = vld [vmem:[%s4 + $0x74] sm:$0xf]
        %v316 = vld [vmem:[%s4 + $0x78] sm:$0xf]
        %v317 = vld [vmem:[%s4 + $0x7c] sm:$0xf]
        %v350 = vunpack.c.l.b16 %v286
        %v351 = vunpack.c.l.b16 %v287
        %v352 = vunpack.c.l.b16 %v288
        %v353 = vunpack.c.l.b16 %v289
        %v354 = vunpack.c.l.b16 %v290
        %v355 = vunpack.c.l.b16 %v291
        %v356 = vunpack.c.l.b16 %v292
        %v357 = vunpack.c.l.b16 %v293
        %v358 = vunpack.c.l.b16 %v294
        %v359 = vunpack.c.l.b16 %v295
        %v360 = vunpack.c.l.b16 %v296
        %v361 = vunpack.c.l.b16 %v297
        %v362 = vunpack.c.l.b16 %v298
        %v363 = vunpack.c.l.b16 %v299
        %v364 = vunpack.c.l.b16 %v300
        %v365 = vunpack.c.l.b16 %v301
        %v366 = vunpack.c.l.b16 %v302
        %v367 = vunpack.c.l.b16 %v303
        %v368 = vunpack.c.l.b16 %v304
        %v369 = vunpack.c.l.b16 %v305
        %v370 = vunpack.c.l.b16 %v306
        %v371 = vunpack.c.l.b16 %v307
        %v372 = vunpack.c.l.b16 %v308
        %v373 = vunpack.c.l.b16 %v309
        %v374 = vunpack.c.l.b16 %v310
        %v375 = vunpack.c.l.b16 %v311
        %v376 = vunpack.c.l.b16 %v312
        %v377 = vunpack.c.l.b16 %v313
        %v378 = vunpack.c.l.b16 %v314
        %v379 = vunpack.c.l.b16 %v315
        %v380 = vunpack.c.l.b16 %v316
        %v381 = vunpack.c.l.b16 %v317
        %v382 = vpack.c.b16 %v351, %v350
        %v383 = vpack.c.b16 %v353, %v352
        %v384 = vpack.c.b16 %v355, %v354
        %v385 = vpack.c.b16 %v357, %v356
        %v386 = vpack.c.b16 %v359, %v358
        %v387 = vpack.c.b16 %v361, %v360
        %v388 = vpack.c.b16 %v363, %v362
        %v389 = vpack.c.b16 %v365, %v364
        %v390 = vpack.c.b16 %v367, %v366
        %v391 = vpack.c.b16 %v369, %v368
        %v392 = vpack.c.b16 %v371, %v370
        %v393 = vpack.c.b16 %v373, %v372
        %v394 = vpack.c.b16 %v375, %v374
        %v395 = vpack.c.b16 %v377, %v376
        %v396 = vpack.c.b16 %v379, %v378
        %v397 = vpack.c.b16 %v381, %v380
        %414 = vmatpush.bf16.msra.mxu0 %v389
        %415 = vmatpush.bf16.msra.mxu0 %v388
        %416 = vmatpush.bf16.msra.mxu0 %v387
        %417 = vmatpush.bf16.msra.mxu0 %v386
        %418 = vmatpush.bf16.msra.mxu0 %v385
        %419 = vmatpush.bf16.msra.mxu0 %v384
        %420 = vmatpush.bf16.msra.mxu0 %v383
        %421 = vmatpush.bf16.msra.mxu0 %v382
        %422 = vmatmul.bf16.gmra.mxu0 %v284
        %v423 = vpop.f32.mrf.mxu0
        %v424 = vadd.f32 0.0, %v423
        %v425 = vpop.f32.mrf.mxu0
        %426 = vdwg.mxu0
        %427 = vmatpush.bf16.msra.mxu0 %v397
        %428 = vmatpush.bf16.msra.mxu0 %v396
        %429 = vmatpush.bf16.msra.mxu0 %v395
        %430 = vmatpush.bf16.msra.mxu0 %v394
        %431 = vmatpush.bf16.msra.mxu0 %v393
        %432 = vmatpush.bf16.msra.mxu0 %v392
        %433 = vmatpush.bf16.msra.mxu0 %v391
        %434 = vmatpush.bf16.msra.mxu0 %v390
        %435 = vmatmul.bf16.gmra.mxu0 %v285
        %v436 = vpop.f32.mrf.mxu0
        %v437 = vadd.f32 %v424, %v436
        %v438 = vpop.f32.mrf.mxu0
        %439 = vdwg.mxu0
        %vm440 = vcmask 261120
        %441 = vst.msk [vmem:[%s254] sm:$0xff] %vm440, %v437
        %v442 = vld [vmem:[%s262] sm:$0xff]
        %443 = vset.pattern.permute.xlu0 0
        %444 = vperm.xlu0 %443, %v442
        %v445 = vpop.permute.xlu0 %444
        %vm446 = vcmp.eq.s32.totalorder %v445, %v272
        %vm447 = vcmp.eq.s32.totalorder %v445, %v273
        %v448 = vsel %vm446, 1, 0
        %v449 = vsel %vm447, 1, 0
        %v450 = vcvt.s32.f32 %v448
        %v451 = vcvt.s32.f32 %v449
        %v452 = vpack.c.bf16 %v450, %v450
        %v453 = vpack.c.bf16 %v451, %v451
        %v454 = vld [vmem:[%s4] sm:$0xf]
        %v455 = vld [vmem:[%s4 + $0x4] sm:$0xf]
        %v456 = vld [vmem:[%s4 + $0x8] sm:$0xf]
        %v457 = vld [vmem:[%s4 + $0xc] sm:$0xf]
        %v458 = vld [vmem:[%s4 + $0x10] sm:$0xf]
        %v459 = vld [vmem:[%s4 + $0x14] sm:$0xf]
        %v460 = vld [vmem:[%s4 + $0x18] sm:$0xf]
        %v461 = vld [vmem:[%s4 + $0x1c] sm:$0xf]
        %v462 = vld [vmem:[%s4 + $0x20] sm:$0xf]
        %v463 = vld [vmem:[%s4 + $0x24] sm:$0xf]
        %v464 = vld [vmem:[%s4 + $0x28] sm:$0xf]
        %v465 = vld [vmem:[%s4 + $0x2c] sm:$0xf]
        %v466 = vld [vmem:[%s4 + $0x30] sm:$0xf]
        %v467 = vld [vmem:[%s4 + $0x34] sm:$0xf]
        %v468 = vld [vmem:[%s4 + $0x38] sm:$0xf]
        %v469 = vld [vmem:[%s4 + $0x3c] sm:$0xf]
        %v470 = vld [vmem:[%s4 + $0x40] sm:$0xf]
        %v471 = vld [vmem:[%s4 + $0x44] sm:$0xf]
        %v472 = vld [vmem:[%s4 + $0x48] sm:$0xf]
        %v473 = vld [vmem:[%s4 + $0x4c] sm:$0xf]
        %v474 = vld [vmem:[%s4 + $0x50] sm:$0xf]
        %v475 = vld [vmem:[%s4 + $0x54] sm:$0xf]
        %v476 = vld [vmem:[%s4 + $0x58] sm:$0xf]
        %v477 = vld [vmem:[%s4 + $0x5c] sm:$0xf]
        %v478 = vld [vmem:[%s4 + $0x60] sm:$0xf]
        %v479 = vld [vmem:[%s4 + $0x64] sm:$0xf]
        %v480 = vld [vmem:[%s4 + $0x68] sm:$0xf]
        %v481 = vld [vmem:[%s4 + $0x6c] sm:$0xf]
        %v482 = vld [vmem:[%s4 + $0x70] sm:$0xf]
        %v483 = vld [vmem:[%s4 + $0x74] sm:$0xf]
        %v484 = vld [vmem:[%s4 + $0x78] sm:$0xf]
        %v485 = vld [vmem:[%s4 + $0x7c] sm:$0xf]
        %v518 = vunpack.c.l.b16 %v454
        %v519 = vunpack.c.l.b16 %v455
        %v520 = vunpack.c.l.b16 %v456
        %v521 = vunpack.c.l.b16 %v457
        %v522 = vunpack.c.l.b16 %v458
        %v523 = vunpack.c.l.b16 %v459
        %v524 = vunpack.c.l.b16 %v460
        %v525 = vunpack.c.l.b16 %v461
        %v526 = vunpack.c.l.b16 %v462
        %v527 = vunpack.c.l.b16 %v463
        %v528 = vunpack.c.l.b16 %v464
        %v529 = vunpack.c.l.b16 %v465
        %v530 = vunpack.c.l.b16 %v466
        %v531 = vunpack.c.l.b16 %v467
        %v532 = vunpack.c.l.b16 %v468
        %v533 = vunpack.c.l.b16 %v469
        %v534 = vunpack.c.l.b16 %v470
        %v535 = vunpack.c.l.b16 %v471
        %v536 = vunpack.c.l.b16 %v472
        %v537 = vunpack.c.l.b16 %v473
        %v538 = vunpack.c.l.b16 %v474
        %v539 = vunpack.c.l.b16 %v475
        %v540 = vunpack.c.l.b16 %v476
        %v541 = vunpack.c.l.b16 %v477
        %v542 = vunpack.c.l.b16 %v478
        %v543 = vunpack.c.l.b16 %v479
        %v544 = vunpack.c.l.b16 %v480
        %v545 = vunpack.c.l.b16 %v481
        %v546 = vunpack.c.l.b16 %v482
        %v547 = vunpack.c.l.b16 %v483
        %v548 = vunpack.c.l.b16 %v484
        %v549 = vunpack.c.l.b16 %v485
        %v550 = vpack.c.b16 %v519, %v518
        %v551 = vpack.c.b16 %v521, %v520
        %v552 = vpack.c.b16 %v523, %v522
        %v553 = vpack.c.b16 %v525, %v524
        %v554 = vpack.c.b16 %v527, %v526
        %v555 = vpack.c.b16 %v529, %v528
        %v556 = vpack.c.b16 %v531, %v530
        %v557 = vpack.c.b16 %v533, %v532
        %v558 = vpack.c.b16 %v535, %v534
        %v559 = vpack.c.b16 %v537, %v536
        %v560 = vpack.c.b16 %v539, %v538
        %v561 = vpack.c.b16 %v541, %v540
        %v562 = vpack.c.b16 %v543, %v542
        %v563 = vpack.c.b16 %v545, %v544
        %v564 = vpack.c.b16 %v547, %v546
        %v565 = vpack.c.b16 %v549, %v548
        %582 = vmatpush.bf16.msra.mxu0 %v557
        %583 = vmatpush.bf16.msra.mxu0 %v556
        %584 = vmatpush.bf16.msra.mxu0 %v555
        %585 = vmatpush.bf16.msra.mxu0 %v554
        %586 = vmatpush.bf16.msra.mxu0 %v553
        %587 = vmatpush.bf16.msra.mxu0 %v552
        %588 = vmatpush.bf16.msra.mxu0 %v551
        %589 = vmatpush.bf16.msra.mxu0 %v550
        %590 = vmatmul.bf16.gmra.mxu0 %v452
        %v591 = vpop.f32.mrf.mxu0
        %v592 = vadd.f32 0.0, %v591
        %v593 = vpop.f32.mrf.mxu0
        %594 = vdwg.mxu0
        %595 = vmatpush.bf16.msra.mxu0 %v565
        %596 = vmatpush.bf16.msra.mxu0 %v564
        %597 = vmatpush.bf16.msra.mxu0 %v563
        %598 = vmatpush.bf16.msra.mxu0 %v562
        %599 = vmatpush.bf16.msra.mxu0 %v561
        %600 = vmatpush.bf16.msra.mxu0 %v560
        %601 = vmatpush.bf16.msra.mxu0 %v559
        %602 = vmatpush.bf16.msra.mxu0 %v558
        %603 = vmatmul.bf16.gmra.mxu0 %v453
        %v604 = vpop.f32.mrf.mxu0
        %v605 = vadd.f32 %v592, %v604
        %v606 = vpop.f32.mrf.mxu0
        %607 = vdwg.mxu0
        %609 = vrot.lane.b32.xlu0 %v605, 32
        %v610 = vpop.permute.xlu0 %609
        %vm612 = vcmask 523520
        %613 = vst.msk [vmem:[%s254] sm:$0xff] %vm612, %v610
        %v614 = vld [vmem:[%s266] sm:$0xff]
        %615 = vset.pattern.permute.xlu0 0
        %616 = vperm.xlu0 %615, %v614
        %v617 = vpop.permute.xlu0 %616
        %vm618 = vcmp.eq.s32.totalorder %v617, %v272
        %vm619 = vcmp.eq.s32.totalorder %v617, %v273
        %v620 = vsel %vm618, 1, 0
        %v621 = vsel %vm619, 1, 0
        %v622 = vcvt.s32.f32 %v620
        %v623 = vcvt.s32.f32 %v621
        %v624 = vpack.c.bf16 %v622, %v622
        %v625 = vpack.c.bf16 %v623, %v623
        %v626 = vld [vmem:[%s4] sm:$0xf]
        %v627 = vld [vmem:[%s4 + $0x4] sm:$0xf]
        %v628 = vld [vmem:[%s4 + $0x8] sm:$0xf]
        %v629 = vld [vmem:[%s4 + $0xc] sm:$0xf]
        %v630 = vld [vmem:[%s4 + $0x10] sm:$0xf]
        %v631 = vld [vmem:[%s4 + $0x14] sm:$0xf]
        %v632 = vld [vmem:[%s4 + $0x18] sm:$0xf]
        %v633 = vld [vmem:[%s4 + $0x1c] sm:$0xf]
        %v634 = vld [vmem:[%s4 + $0x20] sm:$0xf]
        %v635 = vld [vmem:[%s4 + $0x24] sm:$0xf]
        %v636 = vld [vmem:[%s4 + $0x28] sm:$0xf]
        %v637 = vld [vmem:[%s4 + $0x2c] sm:$0xf]
        %v638 = vld [vmem:[%s4 + $0x30] sm:$0xf]
        %v639 = vld [vmem:[%s4 + $0x34] sm:$0xf]
        %v640 = vld [vmem:[%s4 + $0x38] sm:$0xf]
        %v641 = vld [vmem:[%s4 + $0x3c] sm:$0xf]
        %v642 = vld [vmem:[%s4 + $0x40] sm:$0xf]
        %v643 = vld [vmem:[%s4 + $0x44] sm:$0xf]
        %v644 = vld [vmem:[%s4 + $0x48] sm:$0xf]
        %v645 = vld [vmem:[%s4 + $0x4c] sm:$0xf]
        %v646 = vld [vmem:[%s4 + $0x50] sm:$0xf]
        %v647 = vld [vmem:[%s4 + $0x54] sm:$0xf]
        %v648 = vld [vmem:[%s4 + $0x58] sm:$0xf]
        %v649 = vld [vmem:[%s4 + $0x5c] sm:$0xf]
        %v650 = vld [vmem:[%s4 + $0x60] sm:$0xf]
        %v651 = vld [vmem:[%s4 + $0x64] sm:$0xf]
        %v652 = vld [vmem:[%s4 + $0x68] sm:$0xf]
        %v653 = vld [vmem:[%s4 + $0x6c] sm:$0xf]
        %v654 = vld [vmem:[%s4 + $0x70] sm:$0xf]
        %v655 = vld [vmem:[%s4 + $0x74] sm:$0xf]
        %v656 = vld [vmem:[%s4 + $0x78] sm:$0xf]
        %v657 = vld [vmem:[%s4 + $0x7c] sm:$0xf]
        %v690 = vunpack.c.l.b16 %v626
        %v691 = vunpack.c.l.b16 %v627
        %v692 = vunpack.c.l.b16 %v628
        %v693 = vunpack.c.l.b16 %v629
        %v694 = vunpack.c.l.b16 %v630
        %v695 = vunpack.c.l.b16 %v631
        %v696 = vunpack.c.l.b16 %v632
        %v697 = vunpack.c.l.b16 %v633
        %v698 = vunpack.c.l.b16 %v634
        %v699 = vunpack.c.l.b16 %v635
        %v700 = vunpack.c.l.b16 %v636
        %v701 = vunpack.c.l.b16 %v637
        %v702 = vunpack.c.l.b16 %v638
        %v703 = vunpack.c.l.b16 %v639
        %v704 = vunpack.c.l.b16 %v640
        %v705 = vunpack.c.l.b16 %v641
        %v706 = vunpack.c.l.b16 %v642
        %v707 = vunpack.c.l.b16 %v643
        %v708 = vunpack.c.l.b16 %v644
        %v709 = vunpack.c.l.b16 %v645
        %v710 = vunpack.c.l.b16 %v646
        %v711 = vunpack.c.l.b16 %v647
        %v712 = vunpack.c.l.b16 %v648
        %v713 = vunpack.c.l.b16 %v649
        %v714 = vunpack.c.l.b16 %v650
        %v715 = vunpack.c.l.b16 %v651
        %v716 = vunpack.c.l.b16 %v652
        %v717 = vunpack.c.l.b16 %v653
        %v718 = vunpack.c.l.b16 %v654
        %v719 = vunpack.c.l.b16 %v655
        %v720 = vunpack.c.l.b16 %v656
        %v721 = vunpack.c.l.b16 %v657
        %v722 = vpack.c.b16 %v691, %v690
        %v723 = vpack.c.b16 %v693, %v692
        %v724 = vpack.c.b16 %v695, %v694
        %v725 = vpack.c.b16 %v697, %v696
        %v726 = vpack.c.b16 %v699, %v698
        %v727 = vpack.c.b16 %v701, %v700
        %v728 = vpack.c.b16 %v703, %v702
        %v729 = vpack.c.b16 %v705, %v704
        %v730 = vpack.c.b16 %v707, %v706
        %v731 = vpack.c.b16 %v709, %v708
        %v732 = vpack.c.b16 %v711, %v710
        %v733 = vpack.c.b16 %v713, %v712
        %v734 = vpack.c.b16 %v715, %v714
        %v735 = vpack.c.b16 %v717, %v716
        %v736 = vpack.c.b16 %v719, %v718
        %v737 = vpack.c.b16 %v721, %v720
        %754 = vmatpush.bf16.msra.mxu0 %v729
        %755 = vmatpush.bf16.msra.mxu0 %v728
        %756 = vmatpush.bf16.msra.mxu0 %v727
        %757 = vmatpush.bf16.msra.mxu0 %v726
        %758 = vmatpush.bf16.msra.mxu0 %v725
        %759 = vmatpush.bf16.msra.mxu0 %v724
        %760 = vmatpush.bf16.msra.mxu0 %v723
        %761 = vmatpush.bf16.msra.mxu0 %v722
        %762 = vmatmul.bf16.gmra.mxu0 %v624
        %v763 = vpop.f32.mrf.mxu0
        %v764 = vadd.f32 0.0, %v763
        %v765 = vpop.f32.mrf.mxu0
        %766 = vdwg.mxu0
        %767 = vmatpush.bf16.msra.mxu0 %v737
        %768 = vmatpush.bf16.msra.mxu0 %v736
        %769 = vmatpush.bf16.msra.mxu0 %v735
        %770 = vmatpush.bf16.msra.mxu0 %v734
        %771 = vmatpush.bf16.msra.mxu0 %v733
        %772 = vmatpush.bf16.msra.mxu0 %v732
        %773 = vmatpush.bf16.msra.mxu0 %v731
        %774 = vmatpush.bf16.msra.mxu0 %v730
        %775 = vmatmul.bf16.gmra.mxu0 %v625
        %v776 = vpop.f32.mrf.mxu0
        %v777 = vadd.f32 %v764, %v776
        %v778 = vpop.f32.mrf.mxu0
        %779 = vdwg.mxu0
        %781 = vrot.lane.b32.xlu0 %v777, 64
        %v782 = vpop.permute.xlu0 %781
        %vm784 = vcmask 785920
        %785 = vst.msk [vmem:[%s254] sm:$0xff] %vm784, %v782
        %v786 = vld [vmem:[%s270] sm:$0xff]
        %787 = vset.pattern.permute.xlu0 0
        %788 = vperm.xlu0 %787, %v786
        %v789 = vpop.permute.xlu0 %788
        %vm790 = vcmp.eq.s32.totalorder %v789, %v272
        %vm791 = vcmp.eq.s32.totalorder %v789, %v273
        %v792 = vsel %vm790, 1, 0
        %v793 = vsel %vm791, 1, 0
        %v794 = vcvt.s32.f32 %v792
        %v795 = vcvt.s32.f32 %v793
        %v796 = vpack.c.bf16 %v794, %v794
        %v797 = vpack.c.bf16 %v795, %v795
        %v798 = vld [vmem:[%s4] sm:$0xf]
        %v799 = vld [vmem:[%s4 + $0x4] sm:$0xf]
        %v800 = vld [vmem:[%s4 + $0x8] sm:$0xf]
        %v801 = vld [vmem:[%s4 + $0xc] sm:$0xf]
        %v802 = vld [vmem:[%s4 + $0x10] sm:$0xf]
        %v803 = vld [vmem:[%s4 + $0x14] sm:$0xf]
        %v804 = vld [vmem:[%s4 + $0x18] sm:$0xf]
        %v805 = vld [vmem:[%s4 + $0x1c] sm:$0xf]
        %v806 = vld [vmem:[%s4 + $0x20] sm:$0xf]
        %v807 = vld [vmem:[%s4 + $0x24] sm:$0xf]
        %v808 = vld [vmem:[%s4 + $0x28] sm:$0xf]
        %v809 = vld [vmem:[%s4 + $0x2c] sm:$0xf]
        %v810 = vld [vmem:[%s4 + $0x30] sm:$0xf]
        %v811 = vld [vmem:[%s4 + $0x34] sm:$0xf]
        %v812 = vld [vmem:[%s4 + $0x38] sm:$0xf]
        %v813 = vld [vmem:[%s4 + $0x3c] sm:$0xf]
        %v814 = vld [vmem:[%s4 + $0x40] sm:$0xf]
        %v815 = vld [vmem:[%s4 + $0x44] sm:$0xf]
        %v816 = vld [vmem:[%s4 + $0x48] sm:$0xf]
        %v817 = vld [vmem:[%s4 + $0x4c] sm:$0xf]
        %v818 = vld [vmem:[%s4 + $0x50] sm:$0xf]
        %v819 = vld [vmem:[%s4 + $0x54] sm:$0xf]
        %v820 = vld [vmem:[%s4 + $0x58] sm:$0xf]
        %v821 = vld [vmem:[%s4 + $0x5c] sm:$0xf]
        %v822 = vld [vmem:[%s4 + $0x60] sm:$0xf]
        %v823 = vld [vmem:[%s4 + $0x64] sm:$0xf]
        %v824 = vld [vmem:[%s4 + $0x68] sm:$0xf]
        %v825 = vld [vmem:[%s4 + $0x6c] sm:$0xf]
        %v826 = vld [vmem:[%s4 + $0x70] sm:$0xf]
        %v827 = vld [vmem:[%s4 + $0x74] sm:$0xf]
        %v828 = vld [vmem:[%s4 + $0x78] sm:$0xf]
        %v829 = vld [vmem:[%s4 + $0x7c] sm:$0xf]
        %v862 = vunpack.c.l.b16 %v798
        %v863 = vunpack.c.l.b16 %v799
        %v864 = vunpack.c.l.b16 %v800
        %v865 = vunpack.c.l.b16 %v801
        %v866 = vunpack.c.l.b16 %v802
        %v867 = vunpack.c.l.b16 %v803
        %v868 = vunpack.c.l.b16 %v804
        %v869 = vunpack.c.l.b16 %v805
        %v870 = vunpack.c.l.b16 %v806
        %v871 = vunpack.c.l.b16 %v807
        %v872 = vunpack.c.l.b16 %v808
        %v873 = vunpack.c.l.b16 %v809
        %v874 = vunpack.c.l.b16 %v810
        %v875 = vunpack.c.l.b16 %v811
        %v876 = vunpack.c.l.b16 %v812
        %v877 = vunpack.c.l.b16 %v813
        %v878 = vunpack.c.l.b16 %v814
        %v879 = vunpack.c.l.b16 %v815
        %v880 = vunpack.c.l.b16 %v816
        %v881 = vunpack.c.l.b16 %v817
        %v882 = vunpack.c.l.b16 %v818
        %v883 = vunpack.c.l.b16 %v819
        %v884 = vunpack.c.l.b16 %v820
        %v885 = vunpack.c.l.b16 %v821
        %v886 = vunpack.c.l.b16 %v822
        %v887 = vunpack.c.l.b16 %v823
        %v888 = vunpack.c.l.b16 %v824
        %v889 = vunpack.c.l.b16 %v825
        %v890 = vunpack.c.l.b16 %v826
        %v891 = vunpack.c.l.b16 %v827
        %v892 = vunpack.c.l.b16 %v828
        %v893 = vunpack.c.l.b16 %v829
        %v894 = vpack.c.b16 %v863, %v862
        %v895 = vpack.c.b16 %v865, %v864
        %v896 = vpack.c.b16 %v867, %v866
        %v897 = vpack.c.b16 %v869, %v868
        %v898 = vpack.c.b16 %v871, %v870
        %v899 = vpack.c.b16 %v873, %v872
        %v900 = vpack.c.b16 %v875, %v874
        %v901 = vpack.c.b16 %v877, %v876
        %v902 = vpack.c.b16 %v879, %v878
        %v903 = vpack.c.b16 %v881, %v880
        %v904 = vpack.c.b16 %v883, %v882
        %v905 = vpack.c.b16 %v885, %v884
        %v906 = vpack.c.b16 %v887, %v886
        %v907 = vpack.c.b16 %v889, %v888
        %v908 = vpack.c.b16 %v891, %v890
        %v909 = vpack.c.b16 %v893, %v892
        %926 = vmatpush.bf16.msra.mxu0 %v901
        %927 = vmatpush.bf16.msra.mxu0 %v900
        %928 = vmatpush.bf16.msra.mxu0 %v899
        %929 = vmatpush.bf16.msra.mxu0 %v898
        %930 = vmatpush.bf16.msra.mxu0 %v897
        %931 = vmatpush.bf16.msra.mxu0 %v896
        %932 = vmatpush.bf16.msra.mxu0 %v895
        %933 = vmatpush.bf16.msra.mxu0 %v894
        %934 = vmatmul.bf16.gmra.mxu0 %v796
        %v935 = vpop.f32.mrf.mxu0
        %v936 = vadd.f32 0.0, %v935
        %v937 = vpop.f32.mrf.mxu0
        %938 = vdwg.mxu0
        %939 = vmatpush.bf16.msra.mxu0 %v909
        %940 = vmatpush.bf16.msra.mxu0 %v908
        %941 = vmatpush.bf16.msra.mxu0 %v907
        %942 = vmatpush.bf16.msra.mxu0 %v906
        %943 = vmatpush.bf16.msra.mxu0 %v905
        %944 = vmatpush.bf16.msra.mxu0 %v904
        %945 = vmatpush.bf16.msra.mxu0 %v903
        %946 = vmatpush.bf16.msra.mxu0 %v902
        %947 = vmatmul.bf16.gmra.mxu0 %v797
        %v948 = vpop.f32.mrf.mxu0
        %v949 = vadd.f32 %v936, %v948
        %v950 = vpop.f32.mrf.mxu0
        %951 = vdwg.mxu0
        %953 = vrot.lane.b32.xlu0 %v949, 96
        %v954 = vpop.permute.xlu0 %953
        %vm956 = vcmask 1048320
        %957 = vst.msk [vmem:[%s254] sm:$0xff] %vm956, %v954
        %s958 = sand.u32 %s152, 1
        %s959 = scalar_lea.sflag [#allocation3], %s958
        %s960 = sand.u32 %s152, 1
        %s961 = smul.addr %s960, 8
        %s962 = scalar_lea.vmem [#allocation2], %s961
        // Predicated region
        $region41: #{tpu_custom_call.1} parent=39 // pred_check
          %p963 = pneg %p162
        $region42: #{tpu_custom_call.1} parent=39 // pred_check_branch
          %965 = sbr.rel (%p963) target = $region44
        $region43: #{tpu_custom_call.1} parent=39 // pred_region
          %967 = vsyncadd %s959, 0
          %s968 = smul.addr %s19, 8
          %s969 = scalar_lea.hbm %s5, %s968
          %s971 = sshll.u32 %s962, 4
          %s972 = int_to_ptr.vmem [resolvable:$true] %s971
          %s973 = sshll.u32 %s969, 4
          %s974 = int_to_ptr.hbm [resolvable:$true] %s973
          %976 = dma.vmem_to_hbm [thread:$0]  %s972, 128, %s974, %s959
        $region44: #{tpu_custom_call.1} parent=39 // pred_fallthru
          _
      $region40: #{tpu_custom_call.1} parent=5 // pred_fallthru
        _
      %p977 = scmp.le.s32.totalorder 2, %s14
      // Predicated region
      $region45: #{tpu_custom_call.1} parent=5 // pred_check
        %p978 = pneg %p977
      $region46: #{tpu_custom_call.1} parent=5 // pred_check_branch
        %980 = sbr.rel (%p978) target = $region48
      $region47: #{tpu_custom_call.1} parent=5 // pred_region
        %s981 = ssub.s32 %s14, 2
        // Predicated region
        $region49: #{tpu_custom_call.1} parent=47 // pred_check
          %p982 = pneg %p168
        $region50: #{tpu_custom_call.1} parent=47 // pred_check_branch
          %984 = sbr.rel (%p982) target = $region52
        $region51: #{tpu_custom_call.1} parent=47 // pred_region
          %s985 = sand.u32 %s153, 1
          %s986 = scalar_lea.sflag [#allocation3], %s985
          %s987 = sand.u32 %s153, 1
          %s988 = smul.addr %s987, 8
          %s989 = scalar_lea.vmem [#allocation2], %s988
          %991 = dma.done %s986, 128
        $region52: #{tpu_custom_call.1} parent=47 // pred_fallthru
          _
      $region48: #{tpu_custom_call.1} parent=5 // pred_fallthru
        _
    $region6: #{tpu_custom_call.1} parent=1 // loop_footer
      %s18 = sadd.s32 1, %s14
    $region7: #{tpu_custom_call.1} parent=1 // loop_footer_branch
      %13 = sbr.rel target = $region3
    $region8: #{tpu_custom_call.1} parent=1 // loop_exit
      _
    %992 = vsyncpa [#allocation3], 1
    %s993 = scalar_lea.sflag [#allocation3], 1
    %994 = vsyncpa %s993, 1

</llo_original>
